<compile_context>
chip_gen: v5e
topology: v5e:2x2
jax: 0.10.0
libtpu: 0.0.40
codegen_flags: <defaults>
</compile_context>

<pallas_src>
import jax
import jax.numpy as jnp
from jax import lax
from jax.experimental import pallas as pl
from jax.experimental.pallas import tpu as pltpu


def gru_kernel(sel_ref, u_ref, whh_ref, bhn_ref, wfc_ref, bfc_ref, o_ref):
    T, B, _ = u_ref.shape
    Hp = whh_ref.shape[0]
    sel = sel_ref[0]                      # selected timestep index == b[-1] - 1

    def step(t, h):
        u_t = u_ref[t]                                                     # (B, 3Hp)
        hh = jnp.dot(h, whh_ref[...], preferred_element_type=jnp.float32)  # (B, 3Hp)
        g = u_t + hh                                                       # r/z pre-acts
        r = jax.nn.sigmoid(g[:, :Hp])
        z = jax.nn.sigmoid(g[:, Hp:2 * Hp])
        n = jnp.tanh(u_t[:, 2 * Hp:] + r * (hh[:, 2 * Hp:] + bhn_ref[...]))
        h_new = (1.0 - z) * n + z * h
        # Advance h only through timestep `sel`; afterwards it freezes at out[:, sel, :].
        keep = (t <= sel).astype(jnp.float32)
        return keep * h_new + (1.0 - keep) * h

    h0 = jnp.zeros((B, Hp), jnp.float32)
    h_sel = lax.fori_loop(0, T, step, h0, unroll=True)

    o_ref[...] = (jnp.dot(h_sel, wfc_ref[...], preferred_element_type=jnp.float32)
                  + bfc_ref[...]).astype(o_ref.dtype)


def _round_up(x, m):
    return ((x + m - 1) // m) * m


def news_gru_forward(tokens, lengths, params):
    """tokens: (B, T) int32, lengths: (B,) int32. Returns (B, C) float32 logits."""
    wih_t = params["wih_t"]   # (V, 3H)  == W_ih^T, gate order (r, z, n)
    whh_t = params["whh_t"]   # (H, 3H)  == W_hh^T
    b_ih = params["b_ih"]     # (3H,)
    b_hh = params["b_hh"]     # (3H,)
    wfc_t = params["wfc_t"]   # (H, C)   == W_fc^T
    b_fc = params["b_fc"]     # (C,)

    B, T = tokens.shape
    H = whh_t.shape[0]
    C = wfc_t.shape[1]
    Hp = _round_up(H, 128)    # lane-dense hidden width
    Cp = _round_up(C, 128)    # lane-dense class width
    f32 = jnp.float32

    # Pre-add biases: b_ih (all gates) + b_hh for the r,z gates.  b_hn stays separate
    # because PyTorch applies it inside the r-gated term of the n gate.
    bias_rz = b_ih + jnp.concatenate([b_hh[:2 * H], jnp.zeros((H,), b_hh.dtype)])
    w_eff = (wih_t + bias_rz[None, :]).astype(f32)                    # (V, 3H)

    # Place each gate block at a 128-lane boundary (zero padding elsewhere).
    def pad_gate_cols(w):                                             # (rows,3H)->(rows,3Hp)
        out = jnp.zeros((w.shape[0], 3 * Hp), f32)
        for gidx in range(3):
            out = out.at[:, gidx * Hp:gidx * Hp + H].set(w[:, gidx * H:(gidx + 1) * H])
        return out

    w_eff_p = pad_gate_cols(w_eff)                                    # (V, 3Hp)
    whh_p = jnp.zeros((Hp, 3 * Hp), f32).at[:H, :].set(pad_gate_cols(whh_t.astype(f32)))
    bhn_p = jnp.zeros((1, Hp), f32).at[0, :H].set(b_hh[2 * H:].astype(f32))
    wfc_p = jnp.zeros((Hp, Cp), f32).at[:H, :C].set(wfc_t.astype(f32))
    bfc_p = jnp.zeros((1, Cp), f32).at[0, :C].set(b_fc.astype(f32))

    # One-hot(eye) embedding @ W_ih^T == row gather of W_eff; gather straight into the
    # time-major layout (T, B, 3Hp) the kernel consumes.
    u_tbg = jnp.take(w_eff_p, tokens.T, axis=0)                       # (T, B, 3Hp)

    # Timestep picked by out[:, b-1, :][:, -1, :]  ==  out[:, b[-1]-1, :].
    sel = (lengths[-1].astype(jnp.int32) - 1).reshape(1)              # (1,) scalar-prefetch

    grid_spec = pltpu.PrefetchScalarGridSpec(
        num_scalar_prefetch=1,
        grid=(1,),                                                    # single invocation
        in_specs=[
            pl.BlockSpec((T, B, 3 * Hp), lambda i, s: (0, 0, 0)),     # U (whole sequence)
            pl.BlockSpec((Hp, 3 * Hp), lambda i, s: (0, 0)),          # W_hh^T (padded)
            pl.BlockSpec((1, Hp), lambda i, s: (0, 0)),               # b_hn
            pl.BlockSpec((Hp, Cp), lambda i, s: (0, 0)),              # W_fc^T (padded)
            pl.BlockSpec((1, Cp), lambda i, s: (0, 0)),               # b_fc
        ],
        out_specs=pl.BlockSpec((B, Cp), lambda i, s: (0, 0)),
    )

    out_pad = pl.pallas_call(
        gru_kernel,
        out_shape=jax.ShapeDtypeStruct((B, Cp), f32),
        grid_spec=grid_spec,
        compiler_params=pltpu.CompilerParams(
            dimension_semantics=("arbitrary",)),
    )(sel, u_tbg, whh_p, bhn_p, wfc_p, bfc_p)

    return out_pad[:, :C]


def reference_forward(tokens, lengths, params):
    """Pure-JAX reference matching PyTorch NewsGRU_eye.forward semantics."""
    wih_t, whh_t = params["wih_t"], params["whh_t"]
    b_ih, b_hh = params["b_ih"], params["b_hh"]
    V = wih_t.shape[0]
    H = whh_t.shape[0]
    B, T = tokens.shape

    emb = jnp.eye(V, dtype=jnp.float32)                  # torch.eye(input_size)
    x = jnp.take(emb, tokens, axis=0)                    # (B, T, V) one-hot

    h = jnp.zeros((B, H), jnp.float32)
    hs = []
    for t in range(T):
        gi = x[:, t, :] @ wih_t + b_ih                   # (B, 3H)
        gh = h @ whh_t + b_hh                            # (B, 3H)
        r = jax.nn.sigmoid(gi[:, :H] + gh[:, :H])
        z = jax.nn.sigmoid(gi[:, H:2 * H] + gh[:, H:2 * H])
        n = jnp.tanh(gi[:, 2 * H:] + r * gh[:, 2 * H:])
        h = (1.0 - z) * n + z * h
        hs.append(h)
    out_seq = jnp.stack(hs, axis=1)                      # (B, T, H)
    one = out_seq[:, lengths - 1, :]                     # (B, B, H), as in the torch code
    one = one[:, -1, :]                                  # (B, H)
    return one @ params["wfc_t"] + params["b_fc"]


if __name__ == "__main__":
    # Small shapes consistent with the module.
    V = 64            # input_size == one-hot embedding width (torch.eye(input_size))
    H = 32            # hidden_size
    C = 4             # num_classes
    B = 4             # batch
    T = 8             # sequence length

    key = jax.random.PRNGKey(0)
    ks = jax.random.split(key, 8)

    params = {
        "wih_t": jax.random.normal(ks[0], (V, 3 * H), jnp.float32) * 0.1,
        "whh_t": jax.random.normal(ks[1], (H, 3 * H), jnp.float32) * 0.1,
        "b_ih":  jax.random.normal(ks[2], (3 * H,), jnp.float32) * 0.1,
        "b_hh":  jax.random.normal(ks[3], (3 * H,), jnp.float32) * 0.1,
        "wfc_t": jax.random.normal(ks[4], (H, C), jnp.float32) * 0.1,
        "b_fc":  jax.random.normal(ks[5], (C,), jnp.float32) * 0.1,
    }

    tokens = jax.random.randint(ks[6], (B, T), 0, V, dtype=jnp.int32)
    lengths = jnp.array([5, 8, 3, 6], dtype=jnp.int32)   # b; selected step = b[-1]-1 = 5

    out = news_gru_forward(tokens, lengths, params)
    out = jax.block_until_ready(out)

    ref = reference_forward(tokens, lengths, params)
    assert out.shape == (B, C)
    assert jnp.allclose(out, ref, atol=5e-4, rtol=5e-4), "mismatch vs JAX reference"

    print("KERNEL_OK")
</pallas_src>

<mosaic_0001>
module attributes {stable_mosaic.version = 11 : i64} {
  func.func @gru_kernel(%arg0: i32, %arg1: memref<1xi32, #tpu.memory_space<smem>>, %arg2: memref<8x4x384xf32, #tpu.memory_space<vmem>>, %arg3: memref<128x384xf32, #tpu.memory_space<vmem>>, %arg4: memref<1x128xf32, #tpu.memory_space<vmem>>, %arg5: memref<128x128xf32, #tpu.memory_space<vmem>>, %arg6: memref<1x128xf32, #tpu.memory_space<vmem>>, %arg7: memref<4x128xf32, #tpu.memory_space<vmem>>) attributes {dimension_semantics = [#tpu.dimension_semantics<arbitrary>], iteration_bounds = array<i64: 1>, scalar_prefetch = 1 : i64, scratch_operands = 0 : i64, tpu.core_type = #tpu.core_type<tc>, window_params = [{pipeline_mode = #tpu.pipeline_mode<synchronous>, transform_indices = @transform_0, window_bounds = array<i64: 8, 4, 384>}, {pipeline_mode = #tpu.pipeline_mode<synchronous>, transform_indices = @transform_1, window_bounds = array<i64: 128, 384>}, {pipeline_mode = #tpu.pipeline_mode<synchronous>, transform_indices = @transform_2, window_bounds = array<i64: 1, 128>}, {pipeline_mode = #tpu.pipeline_mode<synchronous>, transform_indices = @transform_3, window_bounds = array<i64: 128, 128>}, {pipeline_mode = #tpu.pipeline_mode<synchronous>, transform_indices = @transform_4, window_bounds = array<i64: 1, 128>}, {pipeline_mode = #tpu.pipeline_mode<synchronous>, transform_indices = @transform_5, window_bounds = array<i64: 4, 128>}]} {
    %c0 = arith.constant 0 : index
    %0 = memref.load %arg1[%c0] : memref<1xi32, #tpu.memory_space<smem>>
    %cst = arith.constant 0.000000e+00 : f32
    %1 = vector.broadcast %cst : f32 to vector<4x128xf32>
    %c0_i32 = arith.constant 0 : i32
    %2 = arith.index_cast %c0_i32 : i32 to index
    %c0_0 = arith.constant 0 : index
    %c0_1 = arith.constant 0 : index
    %3 = vector.load %arg2[%2, %c0_0, %c0_1] : memref<8x4x384xf32, #tpu.memory_space<vmem>>, vector<1x4x384xf32>
    %4 = vector.shape_cast %3 : vector<1x4x384xf32> to vector<4x384xf32>
    %c0_2 = arith.constant 0 : index
    %c0_3 = arith.constant 0 : index
    %5 = vector.load %arg3[%c0_2, %c0_3] : memref<128x384xf32, #tpu.memory_space<vmem>>, vector<128x384xf32>
    %cst_4 = arith.constant dense<0.000000e+00> : vector<4x384xf32>
    %6 = tpu.matmul %1, %5, %cst_4 {dimension_numbers = #tpu.dot_dimension_numbers<[1], [0], [0], [1], [0, 0, 1, 1], [], []>} : vector<4x128xf32>, vector<128x384xf32>, vector<4x384xf32> -> vector<4x384xf32>
    %7 = arith.addf %4, %6 : vector<4x384xf32>
    %8 = vector.extract_strided_slice %7 {offsets = [0, 0], sizes = [4, 128], strides = [1, 1]} : vector<4x384xf32> to vector<4x128xf32>
    %9 = arith.negf %8 : vector<4x128xf32>
    %10 = math.exp %9 : vector<4x128xf32>
    %cst_5 = arith.constant 1.000000e+00 : f32
    %11 = vector.broadcast %cst_5 : f32 to vector<4x128xf32>
    %12 = arith.addf %11, %10 : vector<4x128xf32>
    %13 = arith.divf %11, %12 : vector<4x128xf32>
    %14 = vector.extract_strided_slice %7 {offsets = [0, 128], sizes = [4, 128], strides = [1, 1]} : vector<4x384xf32> to vector<4x128xf32>
    %15 = arith.negf %14 : vector<4x128xf32>
    %16 = math.exp %15 : vector<4x128xf32>
    %cst_6 = arith.constant 1.000000e+00 : f32
    %17 = vector.broadcast %cst_6 : f32 to vector<4x128xf32>
    %18 = arith.addf %17, %16 : vector<4x128xf32>
    %19 = arith.divf %17, %18 : vector<4x128xf32>
    %20 = vector.extract_strided_slice %4 {offsets = [0, 256], sizes = [4, 128], strides = [1, 1]} : vector<4x384xf32> to vector<4x128xf32>
    %21 = vector.extract_strided_slice %6 {offsets = [0, 256], sizes = [4, 128], strides = [1, 1]} : vector<4x384xf32> to vector<4x128xf32>
    %c0_7 = arith.constant 0 : index
    %c0_8 = arith.constant 0 : index
    %22 = vector.load %arg4[%c0_7, %c0_8] : memref<1x128xf32, #tpu.memory_space<vmem>>, vector<1x128xf32>
    %23 = vector.broadcast %22 : vector<1x128xf32> to vector<4x128xf32>
    %24 = arith.addf %21, %23 : vector<4x128xf32>
    %25 = arith.mulf %13, %24 : vector<4x128xf32>
    %26 = arith.addf %20, %25 : vector<4x128xf32>
    %27 = math.tanh %26 : vector<4x128xf32>
    %cst_9 = arith.constant 1.000000e+00 : f32
    %28 = vector.broadcast %cst_9 : f32 to vector<4x128xf32>
    %29 = arith.subf %28, %19 : vector<4x128xf32>
    %30 = arith.mulf %29, %27 : vector<4x128xf32>
    %31 = arith.mulf %19, %1 : vector<4x128xf32>
    %32 = arith.addf %30, %31 : vector<4x128xf32>
    %33 = arith.cmpi sle, %c0_i32, %0 : i32
    %34 = arith.extui %33 : i1 to i32
    %35 = arith.sitofp %34 : i32 to f32
    %36 = vector.broadcast %35 : f32 to vector<4x128xf32>
    %37 = arith.mulf %36, %32 : vector<4x128xf32>
    %cst_10 = arith.constant 1.000000e+00 : f32
    %38 = arith.subf %cst_10, %35 : f32
    %39 = vector.broadcast %38 : f32 to vector<4x128xf32>
    %40 = arith.mulf %39, %1 : vector<4x128xf32>
    %41 = arith.addf %37, %40 : vector<4x128xf32>
    %c1_i32 = arith.constant 1 : i32
    %42 = arith.index_cast %c1_i32 : i32 to index
    %c0_11 = arith.constant 0 : index
    %c0_12 = arith.constant 0 : index
    %43 = vector.load %arg2[%42, %c0_11, %c0_12] : memref<8x4x384xf32, #tpu.memory_space<vmem>>, vector<1x4x384xf32>
    %44 = vector.shape_cast %43 : vector<1x4x384xf32> to vector<4x384xf32>
    %c0_13 = arith.constant 0 : index
    %c0_14 = arith.constant 0 : index
    %45 = vector.load %arg3[%c0_13, %c0_14] : memref<128x384xf32, #tpu.memory_space<vmem>>, vector<128x384xf32>
    %cst_15 = arith.constant dense<0.000000e+00> : vector<4x384xf32>
    %46 = tpu.matmul %41, %45, %cst_15 {dimension_numbers = #tpu.dot_dimension_numbers<[1], [0], [0], [1], [0, 0, 1, 1], [], []>} : vector<4x128xf32>, vector<128x384xf32>, vector<4x384xf32> -> vector<4x384xf32>
    %47 = arith.addf %44, %46 : vector<4x384xf32>
    %48 = vector.extract_strided_slice %47 {offsets = [0, 0], sizes = [4, 128], strides = [1, 1]} : vector<4x384xf32> to vector<4x128xf32>
    %49 = arith.negf %48 : vector<4x128xf32>
    %50 = math.exp %49 : vector<4x128xf32>
    %cst_16 = arith.constant 1.000000e+00 : f32
    %51 = vector.broadcast %cst_16 : f32 to vector<4x128xf32>
    %52 = arith.addf %51, %50 : vector<4x128xf32>
    %53 = arith.divf %51, %52 : vector<4x128xf32>
    %54 = vector.extract_strided_slice %47 {offsets = [0, 128], sizes = [4, 128], strides = [1, 1]} : vector<4x384xf32> to vector<4x128xf32>
    %55 = arith.negf %54 : vector<4x128xf32>
    %56 = math.exp %55 : vector<4x128xf32>
    %cst_17 = arith.constant 1.000000e+00 : f32
    %57 = vector.broadcast %cst_17 : f32 to vector<4x128xf32>
    %58 = arith.addf %57, %56 : vector<4x128xf32>
    %59 = arith.divf %57, %58 : vector<4x128xf32>
    %60 = vector.extract_strided_slice %44 {offsets = [0, 256], sizes = [4, 128], strides = [1, 1]} : vector<4x384xf32> to vector<4x128xf32>
    %61 = vector.extract_strided_slice %46 {offsets = [0, 256], sizes = [4, 128], strides = [1, 1]} : vector<4x384xf32> to vector<4x128xf32>
    %c0_18 = arith.constant 0 : index
    %c0_19 = arith.constant 0 : index
    %62 = vector.load %arg4[%c0_18, %c0_19] : memref<1x128xf32, #tpu.memory_space<vmem>>, vector<1x128xf32>
    %63 = vector.broadcast %62 : vector<1x128xf32> to vector<4x128xf32>
    %64 = arith.addf %61, %63 : vector<4x128xf32>
    %65 = arith.mulf %53, %64 : vector<4x128xf32>
    %66 = arith.addf %60, %65 : vector<4x128xf32>
    %67 = math.tanh %66 : vector<4x128xf32>
    %cst_20 = arith.constant 1.000000e+00 : f32
    %68 = vector.broadcast %cst_20 : f32 to vector<4x128xf32>
    %69 = arith.subf %68, %59 : vector<4x128xf32>
    %70 = arith.mulf %69, %67 : vector<4x128xf32>
    %71 = arith.mulf %59, %41 : vector<4x128xf32>
    %72 = arith.addf %70, %71 : vector<4x128xf32>
    %73 = arith.cmpi sle, %c1_i32, %0 : i32
    %74 = arith.extui %73 : i1 to i32
    %75 = arith.sitofp %74 : i32 to f32
    %76 = vector.broadcast %75 : f32 to vector<4x128xf32>
    %77 = arith.mulf %76, %72 : vector<4x128xf32>
    %cst_21 = arith.constant 1.000000e+00 : f32
    %78 = arith.subf %cst_21, %75 : f32
    %79 = vector.broadcast %78 : f32 to vector<4x128xf32>
    %80 = arith.mulf %79, %41 : vector<4x128xf32>
    %81 = arith.addf %77, %80 : vector<4x128xf32>
    %c2_i32 = arith.constant 2 : i32
    %82 = arith.index_cast %c2_i32 : i32 to index
    %c0_22 = arith.constant 0 : index
    %c0_23 = arith.constant 0 : index
    %83 = vector.load %arg2[%82, %c0_22, %c0_23] : memref<8x4x384xf32, #tpu.memory_space<vmem>>, vector<1x4x384xf32>
    %84 = vector.shape_cast %83 : vector<1x4x384xf32> to vector<4x384xf32>
    %c0_24 = arith.constant 0 : index
    %c0_25 = arith.constant 0 : index
    %85 = vector.load %arg3[%c0_24, %c0_25] : memref<128x384xf32, #tpu.memory_space<vmem>>, vector<128x384xf32>
    %cst_26 = arith.constant dense<0.000000e+00> : vector<4x384xf32>
    %86 = tpu.matmul %81, %85, %cst_26 {dimension_numbers = #tpu.dot_dimension_numbers<[1], [0], [0], [1], [0, 0, 1, 1], [], []>} : vector<4x128xf32>, vector<128x384xf32>, vector<4x384xf32> -> vector<4x384xf32>
    %87 = arith.addf %84, %86 : vector<4x384xf32>
    %88 = vector.extract_strided_slice %87 {offsets = [0, 0], sizes = [4, 128], strides = [1, 1]} : vector<4x384xf32> to vector<4x128xf32>
    %89 = arith.negf %88 : vector<4x128xf32>
    %90 = math.exp %89 : vector<4x128xf32>
    %cst_27 = arith.constant 1.000000e+00 : f32
    %91 = vector.broadcast %cst_27 : f32 to vector<4x128xf32>
    %92 = arith.addf %91, %90 : vector<4x128xf32>
    %93 = arith.divf %91, %92 : vector<4x128xf32>
    %94 = vector.extract_strided_slice %87 {offsets = [0, 128], sizes = [4, 128], strides = [1, 1]} : vector<4x384xf32> to vector<4x128xf32>
    %95 = arith.negf %94 : vector<4x128xf32>
    %96 = math.exp %95 : vector<4x128xf32>
    %cst_28 = arith.constant 1.000000e+00 : f32
    %97 = vector.broadcast %cst_28 : f32 to vector<4x128xf32>
    %98 = arith.addf %97, %96 : vector<4x128xf32>
    %99 = arith.divf %97, %98 : vector<4x128xf32>
    %100 = vector.extract_strided_slice %84 {offsets = [0, 256], sizes = [4, 128], strides = [1, 1]} : vector<4x384xf32> to vector<4x128xf32>
    %101 = vector.extract_strided_slice %86 {offsets = [0, 256], sizes = [4, 128], strides = [1, 1]} : vector<4x384xf32> to vector<4x128xf32>
    %c0_29 = arith.constant 0 : index
    %c0_30 = arith.constant 0 : index
    %102 = vector.load %arg4[%c0_29, %c0_30] : memref<1x128xf32, #tpu.memory_space<vmem>>, vector<1x128xf32>
    %103 = vector.broadcast %102 : vector<1x128xf32> to vector<4x128xf32>
    %104 = arith.addf %101, %103 : vector<4x128xf32>
    %105 = arith.mulf %93, %104 : vector<4x128xf32>
    %106 = arith.addf %100, %105 : vector<4x128xf32>
    %107 = math.tanh %106 : vector<4x128xf32>
    %cst_31 = arith.constant 1.000000e+00 : f32
    %108 = vector.broadcast %cst_31 : f32 to vector<4x128xf32>
    %109 = arith.subf %108, %99 : vector<4x128xf32>
    %110 = arith.mulf %109, %107 : vector<4x128xf32>
    %111 = arith.mulf %99, %81 : vector<4x128xf32>
    %112 = arith.addf %110, %111 : vector<4x128xf32>
    %113 = arith.cmpi sle, %c2_i32, %0 : i32
    %114 = arith.extui %113 : i1 to i32
    %115 = arith.sitofp %114 : i32 to f32
    %116 = vector.broadcast %115 : f32 to vector<4x128xf32>
    %117 = arith.mulf %116, %112 : vector<4x128xf32>
    %cst_32 = arith.constant 1.000000e+00 : f32
    %118 = arith.subf %cst_32, %115 : f32
    %119 = vector.broadcast %118 : f32 to vector<4x128xf32>
    %120 = arith.mulf %119, %81 : vector<4x128xf32>
    %121 = arith.addf %117, %120 : vector<4x128xf32>
    %c3_i32 = arith.constant 3 : i32
    %122 = arith.index_cast %c3_i32 : i32 to index
    %c0_33 = arith.constant 0 : index
    %c0_34 = arith.constant 0 : index
    %123 = vector.load %arg2[%122, %c0_33, %c0_34] : memref<8x4x384xf32, #tpu.memory_space<vmem>>, vector<1x4x384xf32>
    %124 = vector.shape_cast %123 : vector<1x4x384xf32> to vector<4x384xf32>
    %c0_35 = arith.constant 0 : index
    %c0_36 = arith.constant 0 : index
    %125 = vector.load %arg3[%c0_35, %c0_36] : memref<128x384xf32, #tpu.memory_space<vmem>>, vector<128x384xf32>
    %cst_37 = arith.constant dense<0.000000e+00> : vector<4x384xf32>
    %126 = tpu.matmul %121, %125, %cst_37 {dimension_numbers = #tpu.dot_dimension_numbers<[1], [0], [0], [1], [0, 0, 1, 1], [], []>} : vector<4x128xf32>, vector<128x384xf32>, vector<4x384xf32> -> vector<4x384xf32>
    %127 = arith.addf %124, %126 : vector<4x384xf32>
    %128 = vector.extract_strided_slice %127 {offsets = [0, 0], sizes = [4, 128], strides = [1, 1]} : vector<4x384xf32> to vector<4x128xf32>
    %129 = arith.negf %128 : vector<4x128xf32>
    %130 = math.exp %129 : vector<4x128xf32>
    %cst_38 = arith.constant 1.000000e+00 : f32
    %131 = vector.broadcast %cst_38 : f32 to vector<4x128xf32>
    %132 = arith.addf %131, %130 : vector<4x128xf32>
    %133 = arith.divf %131, %132 : vector<4x128xf32>
    %134 = vector.extract_strided_slice %127 {offsets = [0, 128], sizes = [4, 128], strides = [1, 1]} : vector<4x384xf32> to vector<4x128xf32>
    %135 = arith.negf %134 : vector<4x128xf32>
    %136 = math.exp %135 : vector<4x128xf32>
    %cst_39 = arith.constant 1.000000e+00 : f32
    %137 = vector.broadcast %cst_39 : f32 to vector<4x128xf32>
    %138 = arith.addf %137, %136 : vector<4x128xf32>
    %139 = arith.divf %137, %138 : vector<4x128xf32>
    %140 = vector.extract_strided_slice %124 {offsets = [0, 256], sizes = [4, 128], strides = [1, 1]} : vector<4x384xf32> to vector<4x128xf32>
    %141 = vector.extract_strided_slice %126 {offsets = [0, 256], sizes = [4, 128], strides = [1, 1]} : vector<4x384xf32> to vector<4x128xf32>
    %c0_40 = arith.constant 0 : index
    %c0_41 = arith.constant 0 : index
    %142 = vector.load %arg4[%c0_40, %c0_41] : memref<1x128xf32, #tpu.memory_space<vmem>>, vector<1x128xf32>
    %143 = vector.broadcast %142 : vector<1x128xf32> to vector<4x128xf32>
    %144 = arith.addf %141, %143 : vector<4x128xf32>
    %145 = arith.mulf %133, %144 : vector<4x128xf32>
    %146 = arith.addf %140, %145 : vector<4x128xf32>
    %147 = math.tanh %146 : vector<4x128xf32>
    %cst_42 = arith.constant 1.000000e+00 : f32
    %148 = vector.broadcast %cst_42 : f32 to vector<4x128xf32>
    %149 = arith.subf %148, %139 : vector<4x128xf32>
    %150 = arith.mulf %149, %147 : vector<4x128xf32>
    %151 = arith.mulf %139, %121 : vector<4x128xf32>
    %152 = arith.addf %150, %151 : vector<4x128xf32>
    %153 = arith.cmpi sle, %c3_i32, %0 : i32
    %154 = arith.extui %153 : i1 to i32
    %155 = arith.sitofp %154 : i32 to f32
    %156 = vector.broadcast %155 : f32 to vector<4x128xf32>
    %157 = arith.mulf %156, %152 : vector<4x128xf32>
    %cst_43 = arith.constant 1.000000e+00 : f32
    %158 = arith.subf %cst_43, %155 : f32
    %159 = vector.broadcast %158 : f32 to vector<4x128xf32>
    %160 = arith.mulf %159, %121 : vector<4x128xf32>
    %161 = arith.addf %157, %160 : vector<4x128xf32>
    %c4_i32 = arith.constant 4 : i32
    %162 = arith.index_cast %c4_i32 : i32 to index
    %c0_44 = arith.constant 0 : index
    %c0_45 = arith.constant 0 : index
    %163 = vector.load %arg2[%162, %c0_44, %c0_45] : memref<8x4x384xf32, #tpu.memory_space<vmem>>, vector<1x4x384xf32>
    %164 = vector.shape_cast %163 : vector<1x4x384xf32> to vector<4x384xf32>
    %c0_46 = arith.constant 0 : index
    %c0_47 = arith.constant 0 : index
    %165 = vector.load %arg3[%c0_46, %c0_47] : memref<128x384xf32, #tpu.memory_space<vmem>>, vector<128x384xf32>
    %cst_48 = arith.constant dense<0.000000e+00> : vector<4x384xf32>
    %166 = tpu.matmul %161, %165, %cst_48 {dimension_numbers = #tpu.dot_dimension_numbers<[1], [0], [0], [1], [0, 0, 1, 1], [], []>} : vector<4x128xf32>, vector<128x384xf32>, vector<4x384xf32> -> vector<4x384xf32>
    %167 = arith.addf %164, %166 : vector<4x384xf32>
    %168 = vector.extract_strided_slice %167 {offsets = [0, 0], sizes = [4, 128], strides = [1, 1]} : vector<4x384xf32> to vector<4x128xf32>
    %169 = arith.negf %168 : vector<4x128xf32>
    %170 = math.exp %169 : vector<4x128xf32>
    %cst_49 = arith.constant 1.000000e+00 : f32
    %171 = vector.broadcast %cst_49 : f32 to vector<4x128xf32>
    %172 = arith.addf %171, %170 : vector<4x128xf32>
    %173 = arith.divf %171, %172 : vector<4x128xf32>
    %174 = vector.extract_strided_slice %167 {offsets = [0, 128], sizes = [4, 128], strides = [1, 1]} : vector<4x384xf32> to vector<4x128xf32>
    %175 = arith.negf %174 : vector<4x128xf32>
    %176 = math.exp %175 : vector<4x128xf32>
    %cst_50 = arith.constant 1.000000e+00 : f32
    %177 = vector.broadcast %cst_50 : f32 to vector<4x128xf32>
    %178 = arith.addf %177, %176 : vector<4x128xf32>
    %179 = arith.divf %177, %178 : vector<4x128xf32>
    %180 = vector.extract_strided_slice %164 {offsets = [0, 256], sizes = [4, 128], strides = [1, 1]} : vector<4x384xf32> to vector<4x128xf32>
    %181 = vector.extract_strided_slice %166 {offsets = [0, 256], sizes = [4, 128], strides = [1, 1]} : vector<4x384xf32> to vector<4x128xf32>
    %c0_51 = arith.constant 0 : index
    %c0_52 = arith.constant 0 : index
    %182 = vector.load %arg4[%c0_51, %c0_52] : memref<1x128xf32, #tpu.memory_space<vmem>>, vector<1x128xf32>
    %183 = vector.broadcast %182 : vector<1x128xf32> to vector<4x128xf32>
    %184 = arith.addf %181, %183 : vector<4x128xf32>
    %185 = arith.mulf %173, %184 : vector<4x128xf32>
    %186 = arith.addf %180, %185 : vector<4x128xf32>
    %187 = math.tanh %186 : vector<4x128xf32>
    %cst_53 = arith.constant 1.000000e+00 : f32
    %188 = vector.broadcast %cst_53 : f32 to vector<4x128xf32>
    %189 = arith.subf %188, %179 : vector<4x128xf32>
    %190 = arith.mulf %189, %187 : vector<4x128xf32>
    %191 = arith.mulf %179, %161 : vector<4x128xf32>
    %192 = arith.addf %190, %191 : vector<4x128xf32>
    %193 = arith.cmpi sle, %c4_i32, %0 : i32
    %194 = arith.extui %193 : i1 to i32
    %195 = arith.sitofp %194 : i32 to f32
    %196 = vector.broadcast %195 : f32 to vector<4x128xf32>
    %197 = arith.mulf %196, %192 : vector<4x128xf32>
    %cst_54 = arith.constant 1.000000e+00 : f32
    %198 = arith.subf %cst_54, %195 : f32
    %199 = vector.broadcast %198 : f32 to vector<4x128xf32>
    %200 = arith.mulf %199, %161 : vector<4x128xf32>
    %201 = arith.addf %197, %200 : vector<4x128xf32>
    %c5_i32 = arith.constant 5 : i32
    %202 = arith.index_cast %c5_i32 : i32 to index
    %c0_55 = arith.constant 0 : index
    %c0_56 = arith.constant 0 : index
    %203 = vector.load %arg2[%202, %c0_55, %c0_56] : memref<8x4x384xf32, #tpu.memory_space<vmem>>, vector<1x4x384xf32>
    %204 = vector.shape_cast %203 : vector<1x4x384xf32> to vector<4x384xf32>
    %c0_57 = arith.constant 0 : index
    %c0_58 = arith.constant 0 : index
    %205 = vector.load %arg3[%c0_57, %c0_58] : memref<128x384xf32, #tpu.memory_space<vmem>>, vector<128x384xf32>
    %cst_59 = arith.constant dense<0.000000e+00> : vector<4x384xf32>
    %206 = tpu.matmul %201, %205, %cst_59 {dimension_numbers = #tpu.dot_dimension_numbers<[1], [0], [0], [1], [0, 0, 1, 1], [], []>} : vector<4x128xf32>, vector<128x384xf32>, vector<4x384xf32> -> vector<4x384xf32>
    %207 = arith.addf %204, %206 : vector<4x384xf32>
    %208 = vector.extract_strided_slice %207 {offsets = [0, 0], sizes = [4, 128], strides = [1, 1]} : vector<4x384xf32> to vector<4x128xf32>
    %209 = arith.negf %208 : vector<4x128xf32>
    %210 = math.exp %209 : vector<4x128xf32>
    %cst_60 = arith.constant 1.000000e+00 : f32
    %211 = vector.broadcast %cst_60 : f32 to vector<4x128xf32>
    %212 = arith.addf %211, %210 : vector<4x128xf32>
    %213 = arith.divf %211, %212 : vector<4x128xf32>
    %214 = vector.extract_strided_slice %207 {offsets = [0, 128], sizes = [4, 128], strides = [1, 1]} : vector<4x384xf32> to vector<4x128xf32>
    %215 = arith.negf %214 : vector<4x128xf32>
    %216 = math.exp %215 : vector<4x128xf32>
    %cst_61 = arith.constant 1.000000e+00 : f32
    %217 = vector.broadcast %cst_61 : f32 to vector<4x128xf32>
    %218 = arith.addf %217, %216 : vector<4x128xf32>
    %219 = arith.divf %217, %218 : vector<4x128xf32>
    %220 = vector.extract_strided_slice %204 {offsets = [0, 256], sizes = [4, 128], strides = [1, 1]} : vector<4x384xf32> to vector<4x128xf32>
    %221 = vector.extract_strided_slice %206 {offsets = [0, 256], sizes = [4, 128], strides = [1, 1]} : vector<4x384xf32> to vector<4x128xf32>
    %c0_62 = arith.constant 0 : index
    %c0_63 = arith.constant 0 : index
    %222 = vector.load %arg4[%c0_62, %c0_63] : memref<1x128xf32, #tpu.memory_space<vmem>>, vector<1x128xf32>
    %223 = vector.broadcast %222 : vector<1x128xf32> to vector<4x128xf32>
    %224 = arith.addf %221, %223 : vector<4x128xf32>
    %225 = arith.mulf %213, %224 : vector<4x128xf32>
    %226 = arith.addf %220, %225 : vector<4x128xf32>
    %227 = math.tanh %226 : vector<4x128xf32>
    %cst_64 = arith.constant 1.000000e+00 : f32
    %228 = vector.broadcast %cst_64 : f32 to vector<4x128xf32>
    %229 = arith.subf %228, %219 : vector<4x128xf32>
    %230 = arith.mulf %229, %227 : vector<4x128xf32>
    %231 = arith.mulf %219, %201 : vector<4x128xf32>
    %232 = arith.addf %230, %231 : vector<4x128xf32>
    %233 = arith.cmpi sle, %c5_i32, %0 : i32
    %234 = arith.extui %233 : i1 to i32
    %235 = arith.sitofp %234 : i32 to f32
    %236 = vector.broadcast %235 : f32 to vector<4x128xf32>
    %237 = arith.mulf %236, %232 : vector<4x128xf32>
    %cst_65 = arith.constant 1.000000e+00 : f32
    %238 = arith.subf %cst_65, %235 : f32
    %239 = vector.broadcast %238 : f32 to vector<4x128xf32>
    %240 = arith.mulf %239, %201 : vector<4x128xf32>
    %241 = arith.addf %237, %240 : vector<4x128xf32>
    %c6_i32 = arith.constant 6 : i32
    %242 = arith.index_cast %c6_i32 : i32 to index
    %c0_66 = arith.constant 0 : index
    %c0_67 = arith.constant 0 : index
    %243 = vector.load %arg2[%242, %c0_66, %c0_67] : memref<8x4x384xf32, #tpu.memory_space<vmem>>, vector<1x4x384xf32>
    %244 = vector.shape_cast %243 : vector<1x4x384xf32> to vector<4x384xf32>
    %c0_68 = arith.constant 0 : index
    %c0_69 = arith.constant 0 : index
    %245 = vector.load %arg3[%c0_68, %c0_69] : memref<128x384xf32, #tpu.memory_space<vmem>>, vector<128x384xf32>
    %cst_70 = arith.constant dense<0.000000e+00> : vector<4x384xf32>
    %246 = tpu.matmul %241, %245, %cst_70 {dimension_numbers = #tpu.dot_dimension_numbers<[1], [0], [0], [1], [0, 0, 1, 1], [], []>} : vector<4x128xf32>, vector<128x384xf32>, vector<4x384xf32> -> vector<4x384xf32>
    %247 = arith.addf %244, %246 : vector<4x384xf32>
    %248 = vector.extract_strided_slice %247 {offsets = [0, 0], sizes = [4, 128], strides = [1, 1]} : vector<4x384xf32> to vector<4x128xf32>
    %249 = arith.negf %248 : vector<4x128xf32>
    %250 = math.exp %249 : vector<4x128xf32>
    %cst_71 = arith.constant 1.000000e+00 : f32
    %251 = vector.broadcast %cst_71 : f32 to vector<4x128xf32>
    %252 = arith.addf %251, %250 : vector<4x128xf32>
    %253 = arith.divf %251, %252 : vector<4x128xf32>
    %254 = vector.extract_strided_slice %247 {offsets = [0, 128], sizes = [4, 128], strides = [1, 1]} : vector<4x384xf32> to vector<4x128xf32>
    %255 = arith.negf %254 : vector<4x128xf32>
    %256 = math.exp %255 : vector<4x128xf32>
    %cst_72 = arith.constant 1.000000e+00 : f32
    %257 = vector.broadcast %cst_72 : f32 to vector<4x128xf32>
    %258 = arith.addf %257, %256 : vector<4x128xf32>
    %259 = arith.divf %257, %258 : vector<4x128xf32>
    %260 = vector.extract_strided_slice %244 {offsets = [0, 256], sizes = [4, 128], strides = [1, 1]} : vector<4x384xf32> to vector<4x128xf32>
    %261 = vector.extract_strided_slice %246 {offsets = [0, 256], sizes = [4, 128], strides = [1, 1]} : vector<4x384xf32> to vector<4x128xf32>
    %c0_73 = arith.constant 0 : index
    %c0_74 = arith.constant 0 : index
    %262 = vector.load %arg4[%c0_73, %c0_74] : memref<1x128xf32, #tpu.memory_space<vmem>>, vector<1x128xf32>
    %263 = vector.broadcast %262 : vector<1x128xf32> to vector<4x128xf32>
    %264 = arith.addf %261, %263 : vector<4x128xf32>
    %265 = arith.mulf %253, %264 : vector<4x128xf32>
    %266 = arith.addf %260, %265 : vector<4x128xf32>
    %267 = math.tanh %266 : vector<4x128xf32>
    %cst_75 = arith.constant 1.000000e+00 : f32
    %268 = vector.broadcast %cst_75 : f32 to vector<4x128xf32>
    %269 = arith.subf %268, %259 : vector<4x128xf32>
    %270 = arith.mulf %269, %267 : vector<4x128xf32>
    %271 = arith.mulf %259, %241 : vector<4x128xf32>
    %272 = arith.addf %270, %271 : vector<4x128xf32>
    %273 = arith.cmpi sle, %c6_i32, %0 : i32
    %274 = arith.extui %273 : i1 to i32
    %275 = arith.sitofp %274 : i32 to f32
    %276 = vector.broadcast %275 : f32 to vector<4x128xf32>
    %277 = arith.mulf %276, %272 : vector<4x128xf32>
    %cst_76 = arith.constant 1.000000e+00 : f32
    %278 = arith.subf %cst_76, %275 : f32
    %279 = vector.broadcast %278 : f32 to vector<4x128xf32>
    %280 = arith.mulf %279, %241 : vector<4x128xf32>
    %281 = arith.addf %277, %280 : vector<4x128xf32>
    %c7_i32 = arith.constant 7 : i32
    %282 = arith.index_cast %c7_i32 : i32 to index
    %c0_77 = arith.constant 0 : index
    %c0_78 = arith.constant 0 : index
    %283 = vector.load %arg2[%282, %c0_77, %c0_78] : memref<8x4x384xf32, #tpu.memory_space<vmem>>, vector<1x4x384xf32>
    %284 = vector.shape_cast %283 : vector<1x4x384xf32> to vector<4x384xf32>
    %c0_79 = arith.constant 0 : index
    %c0_80 = arith.constant 0 : index
    %285 = vector.load %arg3[%c0_79, %c0_80] : memref<128x384xf32, #tpu.memory_space<vmem>>, vector<128x384xf32>
    %cst_81 = arith.constant dense<0.000000e+00> : vector<4x384xf32>
    %286 = tpu.matmul %281, %285, %cst_81 {dimension_numbers = #tpu.dot_dimension_numbers<[1], [0], [0], [1], [0, 0, 1, 1], [], []>} : vector<4x128xf32>, vector<128x384xf32>, vector<4x384xf32> -> vector<4x384xf32>
    %287 = arith.addf %284, %286 : vector<4x384xf32>
    %288 = vector.extract_strided_slice %287 {offsets = [0, 0], sizes = [4, 128], strides = [1, 1]} : vector<4x384xf32> to vector<4x128xf32>
    %289 = arith.negf %288 : vector<4x128xf32>
    %290 = math.exp %289 : vector<4x128xf32>
    %cst_82 = arith.constant 1.000000e+00 : f32
    %291 = vector.broadcast %cst_82 : f32 to vector<4x128xf32>
    %292 = arith.addf %291, %290 : vector<4x128xf32>
    %293 = arith.divf %291, %292 : vector<4x128xf32>
    %294 = vector.extract_strided_slice %287 {offsets = [0, 128], sizes = [4, 128], strides = [1, 1]} : vector<4x384xf32> to vector<4x128xf32>
    %295 = arith.negf %294 : vector<4x128xf32>
    %296 = math.exp %295 : vector<4x128xf32>
    %cst_83 = arith.constant 1.000000e+00 : f32
    %297 = vector.broadcast %cst_83 : f32 to vector<4x128xf32>
    %298 = arith.addf %297, %296 : vector<4x128xf32>
    %299 = arith.divf %297, %298 : vector<4x128xf32>
    %300 = vector.extract_strided_slice %284 {offsets = [0, 256], sizes = [4, 128], strides = [1, 1]} : vector<4x384xf32> to vector<4x128xf32>
    %301 = vector.extract_strided_slice %286 {offsets = [0, 256], sizes = [4, 128], strides = [1, 1]} : vector<4x384xf32> to vector<4x128xf32>
    %c0_84 = arith.constant 0 : index
    %c0_85 = arith.constant 0 : index
    %302 = vector.load %arg4[%c0_84, %c0_85] : memref<1x128xf32, #tpu.memory_space<vmem>>, vector<1x128xf32>
    %303 = vector.broadcast %302 : vector<1x128xf32> to vector<4x128xf32>
    %304 = arith.addf %301, %303 : vector<4x128xf32>
    %305 = arith.mulf %293, %304 : vector<4x128xf32>
    %306 = arith.addf %300, %305 : vector<4x128xf32>
    %307 = math.tanh %306 : vector<4x128xf32>
    %cst_86 = arith.constant 1.000000e+00 : f32
    %308 = vector.broadcast %cst_86 : f32 to vector<4x128xf32>
    %309 = arith.subf %308, %299 : vector<4x128xf32>
    %310 = arith.mulf %309, %307 : vector<4x128xf32>
    %311 = arith.mulf %299, %281 : vector<4x128xf32>
    %312 = arith.addf %310, %311 : vector<4x128xf32>
    %313 = arith.cmpi sle, %c7_i32, %0 : i32
    %314 = arith.extui %313 : i1 to i32
    %315 = arith.sitofp %314 : i32 to f32
    %316 = vector.broadcast %315 : f32 to vector<4x128xf32>
    %317 = arith.mulf %316, %312 : vector<4x128xf32>
    %cst_87 = arith.constant 1.000000e+00 : f32
    %318 = arith.subf %cst_87, %315 : f32
    %319 = vector.broadcast %318 : f32 to vector<4x128xf32>
    %320 = arith.mulf %319, %281 : vector<4x128xf32>
    %321 = arith.addf %317, %320 : vector<4x128xf32>
    %c8_i32 = arith.constant 8 : i32
    %c0_88 = arith.constant 0 : index
    %c0_89 = arith.constant 0 : index
    %322 = vector.load %arg5[%c0_88, %c0_89] : memref<128x128xf32, #tpu.memory_space<vmem>>, vector<128x128xf32>
    %cst_90 = arith.constant dense<0.000000e+00> : vector<4x128xf32>
    %323 = tpu.matmul %321, %322, %cst_90 {dimension_numbers = #tpu.dot_dimension_numbers<[1], [0], [0], [1], [0, 0, 1, 1], [], []>} : vector<4x128xf32>, vector<128x128xf32>, vector<4x128xf32> -> vector<4x128xf32>
    %c0_91 = arith.constant 0 : index
    %c0_92 = arith.constant 0 : index
    %324 = vector.load %arg6[%c0_91, %c0_92] : memref<1x128xf32, #tpu.memory_space<vmem>>, vector<1x128xf32>
    %325 = vector.broadcast %324 : vector<1x128xf32> to vector<4x128xf32>
    %326 = arith.addf %323, %325 : vector<4x128xf32>
    %c0_93 = arith.constant 0 : index
    %c0_94 = arith.constant 0 : index
    %327 = vector.load %arg7[%c0_93, %c0_94] : memref<4x128xf32, #tpu.memory_space<vmem>>, vector<4x128xf32>
    tpu.vector_store %arg7[%c0_93, %c0_94], %326 {strides = array<i32>} : memref<4x128xf32, #tpu.memory_space<vmem>>, vector<4x128xf32>,
    return
  }
  func.func @transform_0(%arg0: i32, %arg1: memref<1xi32, #tpu.memory_space<smem>>) -> (i32, i32, i32) {
    %c0_i32 = arith.constant 0 : i32
    %c0_i32_0 = arith.constant 0 : i32
    %c0_i32_1 = arith.constant 0 : i32
    %c0_i32_2 = arith.constant 0 : i32
    return %c0_i32, %c0_i32_0, %c0_i32_1 : i32, i32, i32
  }
  func.func @transform_1(%arg0: i32, %arg1: memref<1xi32, #tpu.memory_space<smem>>) -> (i32, i32) {
    %c0_i32 = arith.constant 0 : i32
    %c0_i32_0 = arith.constant 0 : i32
    %c0_i32_1 = arith.constant 0 : i32
    return %c0_i32, %c0_i32_0 : i32, i32
  }
  func.func @transform_2(%arg0: i32, %arg1: memref<1xi32, #tpu.memory_space<smem>>) -> (i32, i32) {
    %c0_i32 = arith.constant 0 : i32
    %c0_i32_0 = arith.constant 0 : i32
    %c0_i32_1 = arith.constant 0 : i32
    return %c0_i32, %c0_i32_0 : i32, i32
  }
  func.func @transform_3(%arg0: i32, %arg1: memref<1xi32, #tpu.memory_space<smem>>) -> (i32, i32) {
    %c0_i32 = arith.constant 0 : i32
    %c0_i32_0 = arith.constant 0 : i32
    %c0_i32_1 = arith.constant 0 : i32
    return %c0_i32, %c0_i32_0 : i32, i32
  }
  func.func @transform_4(%arg0: i32, %arg1: memref<1xi32, #tpu.memory_space<smem>>) -> (i32, i32) {
    %c0_i32 = arith.constant 0 : i32
    %c0_i32_0 = arith.constant 0 : i32
    %c0_i32_1 = arith.constant 0 : i32
    return %c0_i32, %c0_i32_0 : i32, i32
  }
  func.func @transform_5(%arg0: i32, %arg1: memref<1xi32, #tpu.memory_space<smem>>) -> (i32, i32) {
    %c0_i32 = arith.constant 0 : i32
    %c0_i32_0 = arith.constant 0 : i32
    %c0_i32_1 = arith.constant 0 : i32
    return %c0_i32, %c0_i32_0 : i32, i32
  }
}

</mosaic_0001>

<llo_original>
// kernel: tpu_custom_call.1
$region0: #{tpu_custom_call.1}
  #allocation0 [shape = 'u32[]', space=smem, size = 0x4, offset = 0x4, fixed_abs, tag = 'smem constant byte address 0x4 - core index']
  #allocation1 [shape = 'u32[72,128]{1,0:T(1,128)}', space=vmem, size = 0x9000, scoped, tag = 'internal scratch']
  #allocation2 [shape = 's32[1]{0}', space=sflag, size = 0x4, scoped, tag = 'scoped memory for tpu_custom_call.1']
  #allocation3 [shape = 's32[1]{0:T(128)S(6)}', space=smem, size = 0x200, scoped, tag = 'prefetched SMEM operand 0']
  %s0 = inlined_call_operand.<no memory space> [shape: s32[1], index: 0, kind: input, shape index: {}]
  %s1 = inlined_call_operand.hbm [shape: f32[8,4,384], index: 1, kind: input, shape index: {}]
  %s2 = inlined_call_operand.hbm [shape: f32[128,384], index: 2, kind: input, shape index: {}]
  %s3 = inlined_call_operand.vmem [shape: f32[1,128], index: 3, kind: input, shape index: {}]
  %s4 = inlined_call_operand.hbm [shape: f32[128,128], index: 4, kind: input, shape index: {}]
  %s5 = inlined_call_operand.vmem [shape: f32[1,128], index: 5, kind: input, shape index: {}]
  %s6 = inlined_call_operand.hbm [shape: f32[4,128], index: 6, kind: output, shape index: {}]
  %s7 = sld [smem:[#allocation0]]
  $region42: #{tpu_custom_call.1} parent=0
    _
  %s9 = ssub.s32 1, %s7
  %s10 = scalar_select 0, %s9, %s7
  %11 = sst [smem:[#allocation3]] %s0
  $region1: #{tpu_custom_call.1} parent=0
    #allocation4 [shape = 'u8[49152]{0}', space=vmem, size = 0xc000, scoped, tag = 'input window, operand 1, single buffered']
    #allocation5 [shape = 's32[1]{0}', space=sflag, size = 0x4, scoped, tag = 'scoped memory for tpu_custom_call.1']
    #allocation6 [shape = 's32[1]{0}', space=sflag, size = 0x4, scoped, tag = 'scoped memory for tpu_custom_call.1']
    #allocation7 [shape = 'u8[196608]{0}', space=vmem, size = 0x30000, scoped, tag = 'input window, operand 2, single buffered']
    #allocation8 [shape = 's32[1]{0}', space=sflag, size = 0x4, scoped, tag = 'scoped memory for tpu_custom_call.1']
    #allocation9 [shape = 'u8[65536]{0}', space=vmem, size = 0x10000, scoped, tag = 'input window, operand 4, single buffered']
    #allocation10 [shape = 'u8[2048]{0}', space=vmem, size = 0x800, scoped, tag = 'output window, operand 0, single buffered']
    %12 = vsyncpa [#allocation5], 0
    %13 = vsyncpa [#allocation8], 0
    %14 = vsyncpa [#allocation6], 0
    // Predicated region
    $region2: #{tpu_custom_call.1} parent=1 // pred_check
      _
    $region3: #{tpu_custom_call.1} parent=1 // pred_check_branch
      %16 = sbr.rel (0) target = $region5
    $region4: #{tpu_custom_call.1} parent=1 // pred_region
      %18 = vsyncadd [#allocation5], 0
      %s19 = sshll.u32 %s1, 4
      %s20 = int_to_ptr.hbm [resolvable:$true] %s19
      %s21 = sshll.u32 [#allocation4], 4
      %s22 = int_to_ptr.vmem [resolvable:$true] %s21
      %27 = dma.hbm_to_vmem [thread:$0]  %s20, 1536, %s22, [#allocation5], 192, 192, 12
    $region5: #{tpu_custom_call.1} parent=1 // pred_fallthru
      _
    // Predicated region
    $region6: #{tpu_custom_call.1} parent=1 // pred_check
      _
    $region7: #{tpu_custom_call.1} parent=1 // pred_check_branch
      %29 = sbr.rel (0) target = $region9
    $region8: #{tpu_custom_call.1} parent=1 // pred_region
      %31 = vsyncadd [#allocation8], 0
      %s32 = sshll.u32 %s2, 4
      %s33 = int_to_ptr.hbm [resolvable:$true] %s32
      %s34 = sshll.u32 [#allocation7], 4
      %s35 = int_to_ptr.vmem [resolvable:$true] %s34
      %40 = dma.hbm_to_vmem [thread:$0]  %s33, 6144, %s35, [#allocation8], 384, 384, 24
    $region9: #{tpu_custom_call.1} parent=1 // pred_fallthru
      _
    // Predicated region
    $region10: #{tpu_custom_call.1} parent=1 // pred_check
      _
    $region11: #{tpu_custom_call.1} parent=1 // pred_check_branch
      %42 = sbr.rel (0) target = $region13
    $region12: #{tpu_custom_call.1} parent=1 // pred_region
      _
    $region13: #{tpu_custom_call.1} parent=1 // pred_fallthru
      _
    // Predicated region
    $region14: #{tpu_custom_call.1} parent=1 // pred_check
      _
    $region15: #{tpu_custom_call.1} parent=1 // pred_check_branch
      %44 = sbr.rel (0) target = $region17
    $region16: #{tpu_custom_call.1} parent=1 // pred_region
      %46 = vsyncadd [#allocation8], 0
      %s47 = sshll.u32 %s4, 4
      %s48 = int_to_ptr.hbm [resolvable:$true] %s47
      %s49 = sshll.u32 [#allocation9], 4
      %s50 = int_to_ptr.vmem [resolvable:$true] %s49
      %55 = dma.hbm_to_vmem [thread:$0]  %s48, 2048, %s50, [#allocation8], 128, 128, 8
    $region17: #{tpu_custom_call.1} parent=1 // pred_fallthru
      _
    // Predicated region
    $region18: #{tpu_custom_call.1} parent=1 // pred_check
      _
    $region19: #{tpu_custom_call.1} parent=1 // pred_check_branch
      %57 = sbr.rel (0) target = $region21
    $region20: #{tpu_custom_call.1} parent=1 // pred_region
      _
    $region21: #{tpu_custom_call.1} parent=1 // pred_fallthru
      _
    // Predicated region
    $region22: #{tpu_custom_call.1} parent=1 // pred_check
      _
    $region23: #{tpu_custom_call.1} parent=1 // pred_check_branch
      %59 = sbr.rel (0) target = $region25
    $region24: #{tpu_custom_call.1} parent=1 // pred_region
      %61 = dma.done [#allocation5], 1536
    $region25: #{tpu_custom_call.1} parent=1 // pred_fallthru
      _
    // Predicated region
    $region26: #{tpu_custom_call.1} parent=1 // pred_check
      _
    $region27: #{tpu_custom_call.1} parent=1 // pred_check_branch
      %63 = sbr.rel (0) target = $region29
    $region28: #{tpu_custom_call.1} parent=1 // pred_region
      %65 = dma.done [#allocation8], 6144
    $region29: #{tpu_custom_call.1} parent=1 // pred_fallthru
      _
    // Predicated region
    $region30: #{tpu_custom_call.1} parent=1 // pred_check
      _
    $region31: #{tpu_custom_call.1} parent=1 // pred_check_branch
      %67 = sbr.rel (0) target = $region33
    $region32: #{tpu_custom_call.1} parent=1 // pred_region
      %69 = dma.done [#allocation8], 2048
    $region33: #{tpu_custom_call.1} parent=1 // pred_fallthru
      _
    %s70 = sld [smem:[#allocation3]]
    %v71 = vld [vmem:[#allocation4] sm:$0xff]
    %v72 = vld [vmem:[#allocation4 + $0x8] sm:$0xf]
    %v73 = vld [vmem:[#allocation7] sm:$0xff]
    %v74 = vld [vmem:[#allocation7 + $0x8] sm:$0xff]
    %v75 = vld [vmem:[#allocation7 + $0x10] sm:$0xff]
    %v76 = vld [vmem:[#allocation7 + $0x18] sm:$0xff]
    %v77 = vld [vmem:[#allocation7 + $0x20] sm:$0xff]
    %v78 = vld [vmem:[#allocation7 + $0x28] sm:$0xff]
    %v79 = vld [vmem:[#allocation7 + $0x30] sm:$0xff]
    %v80 = vld [vmem:[#allocation7 + $0x38] sm:$0xff]
    %v81 = vld [vmem:[#allocation7 + $0x40] sm:$0xff]
    %v82 = vld [vmem:[#allocation7 + $0x48] sm:$0xff]
    %v83 = vld [vmem:[#allocation7 + $0x50] sm:$0xff]
    %v84 = vld [vmem:[#allocation7 + $0x58] sm:$0xff]
    %v85 = vld [vmem:[#allocation7 + $0x60] sm:$0xff]
    %v86 = vld [vmem:[#allocation7 + $0x68] sm:$0xff]
    %v87 = vld [vmem:[#allocation7 + $0x70] sm:$0xff]
    %v88 = vld [vmem:[#allocation7 + $0x78] sm:$0xff]
    %v89 = vld [vmem:[#allocation7 + $0x80] sm:$0xff]
    %v90 = vld [vmem:[#allocation7 + $0x88] sm:$0xff]
    %v91 = vld [vmem:[#allocation7 + $0x90] sm:$0xff]
    %v92 = vld [vmem:[#allocation7 + $0x98] sm:$0xff]
    %v93 = vld [vmem:[#allocation7 + $0xa0] sm:$0xff]
    %v94 = vld [vmem:[#allocation7 + $0xa8] sm:$0xff]
    %v95 = vld [vmem:[#allocation7 + $0xb0] sm:$0xff]
    %v96 = vld [vmem:[#allocation7 + $0xb8] sm:$0xff]
    %v97 = vld [vmem:[#allocation7 + $0xc0] sm:$0xff]
    %v98 = vld [vmem:[#allocation7 + $0xc8] sm:$0xff]
    %v99 = vld [vmem:[#allocation7 + $0xd0] sm:$0xff]
    %v100 = vld [vmem:[#allocation7 + $0xd8] sm:$0xff]
    %v101 = vld [vmem:[#allocation7 + $0xe0] sm:$0xff]
    %v102 = vld [vmem:[#allocation7 + $0xe8] sm:$0xff]
    %v103 = vld [vmem:[#allocation7 + $0xf0] sm:$0xff]
    %v104 = vld [vmem:[#allocation7 + $0xf8] sm:$0xff]
    %v105 = vld [vmem:[#allocation7 + $0x100] sm:$0xff]
    %v106 = vld [vmem:[#allocation7 + $0x108] sm:$0xff]
    %v107 = vld [vmem:[#allocation7 + $0x110] sm:$0xff]
    %v108 = vld [vmem:[#allocation7 + $0x118] sm:$0xff]
    %v109 = vld [vmem:[#allocation7 + $0x120] sm:$0xff]
    %v110 = vld [vmem:[#allocation7 + $0x128] sm:$0xff]
    %v111 = vld [vmem:[#allocation7 + $0x130] sm:$0xff]
    %v112 = vld [vmem:[#allocation7 + $0x138] sm:$0xff]
    %v113 = vld [vmem:[#allocation7 + $0x140] sm:$0xff]
    %v114 = vld [vmem:[#allocation7 + $0x148] sm:$0xff]
    %v115 = vld [vmem:[#allocation7 + $0x150] sm:$0xff]
    %v116 = vld [vmem:[#allocation7 + $0x158] sm:$0xff]
    %v117 = vld [vmem:[#allocation7 + $0x160] sm:$0xff]
    %v118 = vld [vmem:[#allocation7 + $0x168] sm:$0xff]
    %v119 = vld [vmem:[#allocation7 + $0x170] sm:$0xff]
    %v120 = vld [vmem:[#allocation7 + $0x178] sm:$0xff]
    %121 = vmatpush.msra.mxu0 %v118
    %122 = vmatpush.msra.mxu0 %v115
    %123 = vmatpush.msra.mxu0 %v112
    %124 = vmatpush.msra.mxu0 %v109
    %125 = vmatpush.msra.mxu0 %v106
    %126 = vmatpush.msra.mxu0 %v103
    %127 = vmatpush.msra.mxu0 %v100
    %128 = vmatpush.msra.mxu0 %v97
    %129 = vmatpush.msra.mxu0 %v94
    %130 = vmatpush.msra.mxu0 %v91
    %131 = vmatpush.msra.mxu0 %v88
    %132 = vmatpush.msra.mxu0 %v85
    %133 = vmatpush.msra.mxu0 %v82
    %134 = vmatpush.msra.mxu0 %v79
    %135 = vmatpush.msra.mxu0 %v76
    %136 = vmatpush.msra.mxu0 %v73
    %137 = vmatmul.f32.gmra.mxu0 0.0
    %v138 = vpop.f32.mrf.mxu0
    %v139 = vadd.f32 0.0, %v138
    %140 = vdwg.mxu0
    %141 = vmatpush.msra.mxu0 %v119
    %142 = vmatpush.msra.mxu0 %v116
    %143 = vmatpush.msra.mxu0 %v113
    %144 = vmatpush.msra.mxu0 %v110
    %145 = vmatpush.msra.mxu0 %v107
    %146 = vmatpush.msra.mxu0 %v104
    %147 = vmatpush.msra.mxu0 %v101
    %148 = vmatpush.msra.mxu0 %v98
    %149 = vmatpush.msra.mxu0 %v95
    %150 = vmatpush.msra.mxu0 %v92
    %151 = vmatpush.msra.mxu0 %v89
    %152 = vmatpush.msra.mxu0 %v86
    %153 = vmatpush.msra.mxu0 %v83
    %154 = vmatpush.msra.mxu0 %v80
    %155 = vmatpush.msra.mxu0 %v77
    %156 = vmatpush.msra.mxu0 %v74
    %157 = vmatmul.f32.gmra.mxu0 0.0
    %v158 = vpop.f32.mrf.mxu0
    %v159 = vadd.f32 0.0, %v158
    %160 = vdwg.mxu0
    %161 = vmatpush.msra.mxu0 %v120
    %162 = vmatpush.msra.mxu0 %v117
    %163 = vmatpush.msra.mxu0 %v114
    %164 = vmatpush.msra.mxu0 %v111
    %165 = vmatpush.msra.mxu0 %v108
    %166 = vmatpush.msra.mxu0 %v105
    %167 = vmatpush.msra.mxu0 %v102
    %168 = vmatpush.msra.mxu0 %v99
    %169 = vmatpush.msra.mxu0 %v96
    %170 = vmatpush.msra.mxu0 %v93
    %171 = vmatpush.msra.mxu0 %v90
    %172 = vmatpush.msra.mxu0 %v87
    %173 = vmatpush.msra.mxu0 %v84
    %174 = vmatpush.msra.mxu0 %v81
    %175 = vmatpush.msra.mxu0 %v78
    %176 = vmatpush.msra.mxu0 %v75
    %177 = vmatmul.f32.gmra.mxu0 0.0
    %v178 = vpop.f32.mrf.mxu0
    %v179 = vadd.f32 0.0, %v178
    %180 = vdwg.mxu0
    %v183 = vrot.slane %v159, 4
    %vm184 = vcmask 1043456
    %v185 = vsel %vm184, %v139, %v183
    %v187 = vadd.f32 %v71, %v185
    %v188 = vxor.u32 %v187, 2147483648
    %v189 = vmul.f32 %v188, 1.442695
    %v190 = vpow.pop %v189
    %v191 = vadd.f32 %v190, 1.0
    %v192 = vrcp.pop %v191
    %v193 = vmul.f32 %v191, %v192
    %v194 = vsub.f32 1.0, %v193
    %v195 = vmul.f32 %v192, %v194
    %v196 = vadd.f32 %v192, %v195
    %vm197 = vweird.f32 %v191
    %vm198 = vweird.f32 %v192
    %vm199 = vmor %vm197, %vm198
    %v200 = vsel %vm199, %v192, %v196
    %v201 = vand.u32 2147483647, %v191
    %vm202 = vcmp.eq.f32.partialorder %v201, 8.507059e+37
    %v203 = vand.u32 %v191, 2147483648
    %v204 = vor.u32 1.1754944e-38, %v203
    %v205 = vsel %vm202, %v204, %v200
    %v206 = vmul.f32 1.0, %v205
    %v208 = vrot.slane %v187, 4
    %v210 = vxor.u32 %v208, 2147483648
    %v211 = vmul.f32 %v210, 1.442695
    %v212 = vpow.pop %v211
    %v213 = vadd.f32 %v212, 1.0
    %v214 = vrcp.pop %v213
    %v215 = vmul.f32 %v213, %v214
    %v216 = vsub.f32 1.0, %v215
    %v217 = vmul.f32 %v214, %v216
    %v218 = vadd.f32 %v214, %v217
    %vm219 = vweird.f32 %v213
    %vm220 = vweird.f32 %v214
    %vm221 = vmor %vm219, %vm220
    %v222 = vsel %vm221, %v214, %v218
    %v223 = vand.u32 2147483647, %v213
    %vm224 = vcmp.eq.f32.partialorder %v223, 8.507059e+37
    %v225 = vand.u32 %v213, 2147483648
    %v226 = vor.u32 1.1754944e-38, %v225
    %v227 = vsel %vm224, %v226, %v222
    %v228 = vmul.f32 1.0, %v227
    %v229 = vld [vmem:[%s3] sm:$0x1]
    %v231 = vperm.slane %v229, 0
    %v233 = vadd.f32 %v179, %v231
    %v234 = vmul.f32 %v206, %v233
    %v235 = vadd.f32 %v72, %v234
    %v236 = vtanh.pop %v235
    %v237 = vsub.f32 1.0, %v228
    %v238 = vmul.f32 %v237, %v236
    %v239 = vmul.f32 %v228, 0.0
    %v240 = vadd.f32 %v238, %v239
    %p241 = scmp.ge.s32.totalorder %s70, 0
    %s242 = scalar_select %p241, 1, 0
    %s243 = scvt.s32.f32 %s242
    %v244 = vstv %s243
    %v245 = vmul.f32 %v244, %v240
    %s246 = ssub.f32 1.0, %s243
    %v247 = vstv %s246
    %v248 = vmul.f32 %v247, 0.0
    %v249 = vadd.f32 %v245, %v248
    %s250 = scalar_lea.vmem [#allocation4], 12
    %v251 = vld [vmem:[%s250] sm:$0xff]
    %v252 = vld [vmem:[%s250 + $0x8] sm:$0xf]
    %253 = vmatpush.msra.mxu0 %v118
    %254 = vmatpush.msra.mxu0 %v115
    %255 = vmatpush.msra.mxu0 %v112
    %256 = vmatpush.msra.mxu0 %v109
    %257 = vmatpush.msra.mxu0 %v106
    %258 = vmatpush.msra.mxu0 %v103
    %259 = vmatpush.msra.mxu0 %v100
    %260 = vmatpush.msra.mxu0 %v97
    %261 = vmatpush.msra.mxu0 %v94
    %262 = vmatpush.msra.mxu0 %v91
    %263 = vmatpush.msra.mxu0 %v88
    %264 = vmatpush.msra.mxu0 %v85
    %265 = vmatpush.msra.mxu0 %v82
    %266 = vmatpush.msra.mxu0 %v79
    %267 = vmatpush.msra.mxu0 %v76
    %268 = vmatpush.msra.mxu0 %v73
    %269 = vmatmul.f32.gmra.mxu0 %v249
    %v270 = vpop.f32.mrf.mxu0
    %v271 = vadd.f32 0.0, %v270
    %272 = vdwg.mxu0
    %273 = vmatpush.msra.mxu0 %v119
    %274 = vmatpush.msra.mxu0 %v116
    %275 = vmatpush.msra.mxu0 %v113
    %276 = vmatpush.msra.mxu0 %v110
    %277 = vmatpush.msra.mxu0 %v107
    %278 = vmatpush.msra.mxu0 %v104
    %279 = vmatpush.msra.mxu0 %v101
    %280 = vmatpush.msra.mxu0 %v98
    %281 = vmatpush.msra.mxu0 %v95
    %282 = vmatpush.msra.mxu0 %v92
    %283 = vmatpush.msra.mxu0 %v89
    %284 = vmatpush.msra.mxu0 %v86
    %285 = vmatpush.msra.mxu0 %v83
    %286 = vmatpush.msra.mxu0 %v80
    %287 = vmatpush.msra.mxu0 %v77
    %288 = vmatpush.msra.mxu0 %v74
    %289 = vmatmul.f32.gmra.mxu0 %v249
    %v290 = vpop.f32.mrf.mxu0
    %v291 = vadd.f32 0.0, %v290
    %292 = vdwg.mxu0
    %293 = vmatpush.msra.mxu0 %v120
    %294 = vmatpush.msra.mxu0 %v117
    %295 = vmatpush.msra.mxu0 %v114
    %296 = vmatpush.msra.mxu0 %v111
    %297 = vmatpush.msra.mxu0 %v108
    %298 = vmatpush.msra.mxu0 %v105
    %299 = vmatpush.msra.mxu0 %v102
    %300 = vmatpush.msra.mxu0 %v99
    %301 = vmatpush.msra.mxu0 %v96
    %302 = vmatpush.msra.mxu0 %v93
    %303 = vmatpush.msra.mxu0 %v90
    %304 = vmatpush.msra.mxu0 %v87
    %305 = vmatpush.msra.mxu0 %v84
    %306 = vmatpush.msra.mxu0 %v81
    %307 = vmatpush.msra.mxu0 %v78
    %308 = vmatpush.msra.mxu0 %v75
    %309 = vmatmul.f32.gmra.mxu0 %v249
    %v310 = vpop.f32.mrf.mxu0
    %v311 = vadd.f32 0.0, %v310
    %312 = vdwg.mxu0
    %v315 = vrot.slane %v291, 4
    %v316 = vsel %vm184, %v271, %v315
    %v318 = vadd.f32 %v251, %v316
    %v319 = vxor.u32 %v318, 2147483648
    %v320 = vmul.f32 %v319, 1.442695
    %v321 = vpow.pop %v320
    %v322 = vadd.f32 %v321, 1.0
    %v323 = vrcp.pop %v322
    %v324 = vmul.f32 %v322, %v323
    %v325 = vsub.f32 1.0, %v324
    %v326 = vmul.f32 %v323, %v325
    %v327 = vadd.f32 %v323, %v326
    %vm328 = vweird.f32 %v322
    %vm329 = vweird.f32 %v323
    %vm330 = vmor %vm328, %vm329
    %v331 = vsel %vm330, %v323, %v327
    %v332 = vand.u32 2147483647, %v322
    %vm333 = vcmp.eq.f32.partialorder %v332, 8.507059e+37
    %v334 = vand.u32 %v322, 2147483648
    %v335 = vor.u32 1.1754944e-38, %v334
    %v336 = vsel %vm333, %v335, %v331
    %v337 = vmul.f32 1.0, %v336
    %v339 = vrot.slane %v318, 4
    %v341 = vxor.u32 %v339, 2147483648
    %v342 = vmul.f32 %v341, 1.442695
    %v343 = vpow.pop %v342
    %v344 = vadd.f32 %v343, 1.0
    %v345 = vrcp.pop %v344
    %v346 = vmul.f32 %v344, %v345
    %v347 = vsub.f32 1.0, %v346
    %v348 = vmul.f32 %v345, %v347
    %v349 = vadd.f32 %v345, %v348
    %vm350 = vweird.f32 %v344
    %vm351 = vweird.f32 %v345
    %vm352 = vmor %vm350, %vm351
    %v353 = vsel %vm352, %v345, %v349
    %v354 = vand.u32 2147483647, %v344
    %vm355 = vcmp.eq.f32.partialorder %v354, 8.507059e+37
    %v356 = vand.u32 %v344, 2147483648
    %v357 = vor.u32 1.1754944e-38, %v356
    %v358 = vsel %vm355, %v357, %v353
    %v359 = vmul.f32 1.0, %v358
    %v360 = vadd.f32 %v311, %v231
    %v361 = vmul.f32 %v337, %v360
    %v362 = vadd.f32 %v252, %v361
    %v363 = vtanh.pop %v362
    %v364 = vsub.f32 1.0, %v359
    %v365 = vmul.f32 %v364, %v363
    %v366 = vmul.f32 %v359, %v249
    %v367 = vadd.f32 %v365, %v366
    %p368 = scmp.ge.s32.totalorder %s70, 1
    %s369 = scalar_select %p368, 1, 0
    %s370 = scvt.s32.f32 %s369
    %v371 = vstv %s370
    %v372 = vmul.f32 %v371, %v367
    %s373 = ssub.f32 1.0, %s370
    %v374 = vstv %s373
    %v375 = vmul.f32 %v374, %v249
    %v376 = vadd.f32 %v372, %v375
    %s377 = scalar_lea.vmem [#allocation4], 24
    %v378 = vld [vmem:[%s377] sm:$0xff]
    %v379 = vld [vmem:[%s377 + $0x8] sm:$0xf]
    %380 = vmatpush.msra.mxu0 %v118
    %381 = vmatpush.msra.mxu0 %v115
    %382 = vmatpush.msra.mxu0 %v112
    %383 = vmatpush.msra.mxu0 %v109
    %384 = vmatpush.msra.mxu0 %v106
    %385 = vmatpush.msra.mxu0 %v103
    %386 = vmatpush.msra.mxu0 %v100
    %387 = vmatpush.msra.mxu0 %v97
    %388 = vmatpush.msra.mxu0 %v94
    %389 = vmatpush.msra.mxu0 %v91
    %390 = vmatpush.msra.mxu0 %v88
    %391 = vmatpush.msra.mxu0 %v85
    %392 = vmatpush.msra.mxu0 %v82
    %393 = vmatpush.msra.mxu0 %v79
    %394 = vmatpush.msra.mxu0 %v76
    %395 = vmatpush.msra.mxu0 %v73
    %396 = vmatmul.f32.gmra.mxu0 %v376
    %v397 = vpop.f32.mrf.mxu0
    %v398 = vadd.f32 0.0, %v397
    %399 = vdwg.mxu0
    %400 = vmatpush.msra.mxu0 %v119
    %401 = vmatpush.msra.mxu0 %v116
    %402 = vmatpush.msra.mxu0 %v113
    %403 = vmatpush.msra.mxu0 %v110
    %404 = vmatpush.msra.mxu0 %v107
    %405 = vmatpush.msra.mxu0 %v104
    %406 = vmatpush.msra.mxu0 %v101
    %407 = vmatpush.msra.mxu0 %v98
    %408 = vmatpush.msra.mxu0 %v95
    %409 = vmatpush.msra.mxu0 %v92
    %410 = vmatpush.msra.mxu0 %v89
    %411 = vmatpush.msra.mxu0 %v86
    %412 = vmatpush.msra.mxu0 %v83
    %413 = vmatpush.msra.mxu0 %v80
    %414 = vmatpush.msra.mxu0 %v77
    %415 = vmatpush.msra.mxu0 %v74
    %416 = vmatmul.f32.gmra.mxu0 %v376
    %v417 = vpop.f32.mrf.mxu0
    %v418 = vadd.f32 0.0, %v417
    %419 = vdwg.mxu0
    %420 = vmatpush.msra.mxu0 %v120
    %421 = vmatpush.msra.mxu0 %v117
    %422 = vmatpush.msra.mxu0 %v114
    %423 = vmatpush.msra.mxu0 %v111
    %424 = vmatpush.msra.mxu0 %v108
    %425 = vmatpush.msra.mxu0 %v105
    %426 = vmatpush.msra.mxu0 %v102
    %427 = vmatpush.msra.mxu0 %v99
    %428 = vmatpush.msra.mxu0 %v96
    %429 = vmatpush.msra.mxu0 %v93
    %430 = vmatpush.msra.mxu0 %v90
    %431 = vmatpush.msra.mxu0 %v87
    %432 = vmatpush.msra.mxu0 %v84
    %433 = vmatpush.msra.mxu0 %v81
    %434 = vmatpush.msra.mxu0 %v78
    %435 = vmatpush.msra.mxu0 %v75
    %436 = vmatmul.f32.gmra.mxu0 %v376
    %v437 = vpop.f32.mrf.mxu0
    %v438 = vadd.f32 0.0, %v437
    %439 = vdwg.mxu0
    %v442 = vrot.slane %v418, 4
    %v443 = vsel %vm184, %v398, %v442
    %v445 = vadd.f32 %v378, %v443
    %v446 = vxor.u32 %v445, 2147483648
    %v447 = vmul.f32 %v446, 1.442695
    %v448 = vpow.pop %v447
    %v449 = vadd.f32 %v448, 1.0
    %v450 = vrcp.pop %v449
    %v451 = vmul.f32 %v449, %v450
    %v452 = vsub.f32 1.0, %v451
    %v453 = vmul.f32 %v450, %v452
    %v454 = vadd.f32 %v450, %v453
    %vm455 = vweird.f32 %v449
    %vm456 = vweird.f32 %v450
    %vm457 = vmor %vm455, %vm456
    %v458 = vsel %vm457, %v450, %v454
    %v459 = vand.u32 2147483647, %v449
    %vm460 = vcmp.eq.f32.partialorder %v459, 8.507059e+37
    %v461 = vand.u32 %v449, 2147483648
    %v462 = vor.u32 1.1754944e-38, %v461
    %v463 = vsel %vm460, %v462, %v458
    %v464 = vmul.f32 1.0, %v463
    %v466 = vrot.slane %v445, 4
    %v468 = vxor.u32 %v466, 2147483648
    %v469 = vmul.f32 %v468, 1.442695
    %v470 = vpow.pop %v469
    %v471 = vadd.f32 %v470, 1.0
    %v472 = vrcp.pop %v471
    %v473 = vmul.f32 %v471, %v472
    %v474 = vsub.f32 1.0, %v473
    %v475 = vmul.f32 %v472, %v474
    %v476 = vadd.f32 %v472, %v475
    %vm477 = vweird.f32 %v471
    %vm478 = vweird.f32 %v472
    %vm479 = vmor %vm477, %vm478
    %v480 = vsel %vm479, %v472, %v476
    %v481 = vand.u32 2147483647, %v471
    %vm482 = vcmp.eq.f32.partialorder %v481, 8.507059e+37
    %v483 = vand.u32 %v471, 2147483648
    %v484 = vor.u32 1.1754944e-38, %v483
    %v485 = vsel %vm482, %v484, %v480
    %v486 = vmul.f32 1.0, %v485
    %v487 = vadd.f32 %v438, %v231
    %v488 = vmul.f32 %v464, %v487
    %v489 = vadd.f32 %v379, %v488
    %v490 = vtanh.pop %v489
    %v491 = vsub.f32 1.0, %v486
    %v492 = vmul.f32 %v491, %v490
    %v493 = vmul.f32 %v486, %v376
    %v494 = vadd.f32 %v492, %v493
    %p495 = scmp.ge.s32.totalorder %s70, 2
    %s496 = scalar_select %p495, 1, 0
    %s497 = scvt.s32.f32 %s496
    %v498 = vstv %s497
    %v499 = vmul.f32 %v498, %v494
    %s500 = ssub.f32 1.0, %s497
    %v501 = vstv %s500
    %v502 = vmul.f32 %v501, %v376
    %v503 = vadd.f32 %v499, %v502
    %s504 = scalar_lea.vmem [#allocation4], 36
    %v505 = vld [vmem:[%s504] sm:$0xff]
    %v506 = vld [vmem:[%s504 + $0x8] sm:$0xf]
    %507 = vmatpush.msra.mxu0 %v118
    %508 = vmatpush.msra.mxu0 %v115
    %509 = vmatpush.msra.mxu0 %v112
    %510 = vmatpush.msra.mxu0 %v109
    %511 = vmatpush.msra.mxu0 %v106
    %512 = vmatpush.msra.mxu0 %v103
    %513 = vmatpush.msra.mxu0 %v100
    %514 = vmatpush.msra.mxu0 %v97
    %515 = vmatpush.msra.mxu0 %v94
    %516 = vmatpush.msra.mxu0 %v91
    %517 = vmatpush.msra.mxu0 %v88
    %518 = vmatpush.msra.mxu0 %v85
    %519 = vmatpush.msra.mxu0 %v82
    %520 = vmatpush.msra.mxu0 %v79
    %521 = vmatpush.msra.mxu0 %v76
    %522 = vmatpush.msra.mxu0 %v73
    %523 = vmatmul.f32.gmra.mxu0 %v503
    %v524 = vpop.f32.mrf.mxu0
    %v525 = vadd.f32 0.0, %v524
    %526 = vdwg.mxu0
    %527 = vmatpush.msra.mxu0 %v119
    %528 = vmatpush.msra.mxu0 %v116
    %529 = vmatpush.msra.mxu0 %v113
    %530 = vmatpush.msra.mxu0 %v110
    %531 = vmatpush.msra.mxu0 %v107
    %532 = vmatpush.msra.mxu0 %v104
    %533 = vmatpush.msra.mxu0 %v101
    %534 = vmatpush.msra.mxu0 %v98
    %535 = vmatpush.msra.mxu0 %v95
    %536 = vmatpush.msra.mxu0 %v92
    %537 = vmatpush.msra.mxu0 %v89
    %538 = vmatpush.msra.mxu0 %v86
    %539 = vmatpush.msra.mxu0 %v83
    %540 = vmatpush.msra.mxu0 %v80
    %541 = vmatpush.msra.mxu0 %v77
    %542 = vmatpush.msra.mxu0 %v74
    %543 = vmatmul.f32.gmra.mxu0 %v503
    %v544 = vpop.f32.mrf.mxu0
    %v545 = vadd.f32 0.0, %v544
    %546 = vdwg.mxu0
    %547 = vmatpush.msra.mxu0 %v120
    %548 = vmatpush.msra.mxu0 %v117
    %549 = vmatpush.msra.mxu0 %v114
    %550 = vmatpush.msra.mxu0 %v111
    %551 = vmatpush.msra.mxu0 %v108
    %552 = vmatpush.msra.mxu0 %v105
    %553 = vmatpush.msra.mxu0 %v102
    %554 = vmatpush.msra.mxu0 %v99
    %555 = vmatpush.msra.mxu0 %v96
    %556 = vmatpush.msra.mxu0 %v93
    %557 = vmatpush.msra.mxu0 %v90
    %558 = vmatpush.msra.mxu0 %v87
    %559 = vmatpush.msra.mxu0 %v84
    %560 = vmatpush.msra.mxu0 %v81
    %561 = vmatpush.msra.mxu0 %v78
    %562 = vmatpush.msra.mxu0 %v75
    %563 = vmatmul.f32.gmra.mxu0 %v503
    %v564 = vpop.f32.mrf.mxu0
    %v565 = vadd.f32 0.0, %v564
    %566 = vdwg.mxu0
    %v569 = vrot.slane %v545, 4
    %v570 = vsel %vm184, %v525, %v569
    %v572 = vadd.f32 %v505, %v570
    %v573 = vxor.u32 %v572, 2147483648
    %v574 = vmul.f32 %v573, 1.442695
    %v575 = vpow.pop %v574
    %v576 = vadd.f32 %v575, 1.0
    %v577 = vrcp.pop %v576
    %v578 = vmul.f32 %v576, %v577
    %v579 = vsub.f32 1.0, %v578
    %v580 = vmul.f32 %v577, %v579
    %v581 = vadd.f32 %v577, %v580
    %vm582 = vweird.f32 %v576
    %vm583 = vweird.f32 %v577
    %vm584 = vmor %vm582, %vm583
    %v585 = vsel %vm584, %v577, %v581
    %v586 = vand.u32 2147483647, %v576
    %vm587 = vcmp.eq.f32.partialorder %v586, 8.507059e+37
    %v588 = vand.u32 %v576, 2147483648
    %v589 = vor.u32 1.1754944e-38, %v588
    %v590 = vsel %vm587, %v589, %v585
    %v591 = vmul.f32 1.0, %v590
    %v593 = vrot.slane %v572, 4
    %v595 = vxor.u32 %v593, 2147483648
    %v596 = vmul.f32 %v595, 1.442695
    %v597 = vpow.pop %v596
    %v598 = vadd.f32 %v597, 1.0
    %v599 = vrcp.pop %v598
    %v600 = vmul.f32 %v598, %v599
    %v601 = vsub.f32 1.0, %v600
    %v602 = vmul.f32 %v599, %v601
    %v603 = vadd.f32 %v599, %v602
    %vm604 = vweird.f32 %v598
    %vm605 = vweird.f32 %v599
    %vm606 = vmor %vm604, %vm605
    %v607 = vsel %vm606, %v599, %v603
    %v608 = vand.u32 2147483647, %v598
    %vm609 = vcmp.eq.f32.partialorder %v608, 8.507059e+37
    %v610 = vand.u32 %v598, 2147483648
    %v611 = vor.u32 1.1754944e-38, %v610
    %v612 = vsel %vm609, %v611, %v607
    %v613 = vmul.f32 1.0, %v612
    %v614 = vadd.f32 %v565, %v231
    %v615 = vmul.f32 %v591, %v614
    %v616 = vadd.f32 %v506, %v615
    %v617 = vtanh.pop %v616
    %v618 = vsub.f32 1.0, %v613
    %v619 = vmul.f32 %v618, %v617
    %v620 = vmul.f32 %v613, %v503
    %v621 = vadd.f32 %v619, %v620
    %p622 = scmp.ge.s32.totalorder %s70, 3
    %s623 = scalar_select %p622, 1, 0
    %s624 = scvt.s32.f32 %s623
    %v625 = vstv %s624
    %v626 = vmul.f32 %v625, %v621
    %s627 = ssub.f32 1.0, %s624
    %v628 = vstv %s627
    %v629 = vmul.f32 %v628, %v503
    %v630 = vadd.f32 %v626, %v629
    %s631 = scalar_lea.vmem [#allocation4], 48
    %v632 = vld [vmem:[%s631] sm:$0xff]
    %v633 = vld [vmem:[%s631 + $0x8] sm:$0xf]
    %634 = vmatpush.msra.mxu0 %v118
    %635 = vmatpush.msra.mxu0 %v115
    %636 = vmatpush.msra.mxu0 %v112
    %637 = vmatpush.msra.mxu0 %v109
    %638 = vmatpush.msra.mxu0 %v106
    %639 = vmatpush.msra.mxu0 %v103
    %640 = vmatpush.msra.mxu0 %v100
    %641 = vmatpush.msra.mxu0 %v97
    %642 = vmatpush.msra.mxu0 %v94
    %643 = vmatpush.msra.mxu0 %v91
    %644 = vmatpush.msra.mxu0 %v88
    %645 = vmatpush.msra.mxu0 %v85
    %646 = vmatpush.msra.mxu0 %v82
    %647 = vmatpush.msra.mxu0 %v79
    %648 = vmatpush.msra.mxu0 %v76
    %649 = vmatpush.msra.mxu0 %v73
    %650 = vmatmul.f32.gmra.mxu0 %v630
    %v651 = vpop.f32.mrf.mxu0
    %v652 = vadd.f32 0.0, %v651
    %653 = vdwg.mxu0
    %654 = vmatpush.msra.mxu0 %v119
    %655 = vmatpush.msra.mxu0 %v116
    %656 = vmatpush.msra.mxu0 %v113
    %657 = vmatpush.msra.mxu0 %v110
    %658 = vmatpush.msra.mxu0 %v107
    %659 = vmatpush.msra.mxu0 %v104
    %660 = vmatpush.msra.mxu0 %v101
    %661 = vmatpush.msra.mxu0 %v98
    %662 = vmatpush.msra.mxu0 %v95
    %663 = vmatpush.msra.mxu0 %v92
    %664 = vmatpush.msra.mxu0 %v89
    %665 = vmatpush.msra.mxu0 %v86
    %666 = vmatpush.msra.mxu0 %v83
    %667 = vmatpush.msra.mxu0 %v80
    %668 = vmatpush.msra.mxu0 %v77
    %669 = vmatpush.msra.mxu0 %v74
    %670 = vmatmul.f32.gmra.mxu0 %v630
    %v671 = vpop.f32.mrf.mxu0
    %v672 = vadd.f32 0.0, %v671
    %673 = vdwg.mxu0
    %674 = vmatpush.msra.mxu0 %v120
    %675 = vmatpush.msra.mxu0 %v117
    %676 = vmatpush.msra.mxu0 %v114
    %677 = vmatpush.msra.mxu0 %v111
    %678 = vmatpush.msra.mxu0 %v108
    %679 = vmatpush.msra.mxu0 %v105
    %680 = vmatpush.msra.mxu0 %v102
    %681 = vmatpush.msra.mxu0 %v99
    %682 = vmatpush.msra.mxu0 %v96
    %683 = vmatpush.msra.mxu0 %v93
    %684 = vmatpush.msra.mxu0 %v90
    %685 = vmatpush.msra.mxu0 %v87
    %686 = vmatpush.msra.mxu0 %v84
    %687 = vmatpush.msra.mxu0 %v81
    %688 = vmatpush.msra.mxu0 %v78
    %689 = vmatpush.msra.mxu0 %v75
    %690 = vmatmul.f32.gmra.mxu0 %v630
    %v691 = vpop.f32.mrf.mxu0
    %v692 = vadd.f32 0.0, %v691
    %693 = vdwg.mxu0
    %v696 = vrot.slane %v672, 4
    %v697 = vsel %vm184, %v652, %v696
    %v699 = vadd.f32 %v632, %v697
    %v700 = vxor.u32 %v699, 2147483648
    %v701 = vmul.f32 %v700, 1.442695
    %v702 = vpow.pop %v701
    %v703 = vadd.f32 %v702, 1.0
    %v704 = vrcp.pop %v703
    %v705 = vmul.f32 %v703, %v704
    %v706 = vsub.f32 1.0, %v705
    %v707 = vmul.f32 %v704, %v706
    %v708 = vadd.f32 %v704, %v707
    %vm709 = vweird.f32 %v703
    %vm710 = vweird.f32 %v704
    %vm711 = vmor %vm709, %vm710
    %v712 = vsel %vm711, %v704, %v708
    %v713 = vand.u32 2147483647, %v703
    %vm714 = vcmp.eq.f32.partialorder %v713, 8.507059e+37
    %v715 = vand.u32 %v703, 2147483648
    %v716 = vor.u32 1.1754944e-38, %v715
    %v717 = vsel %vm714, %v716, %v712
    %v718 = vmul.f32 1.0, %v717
    %v720 = vrot.slane %v699, 4
    %v722 = vxor.u32 %v720, 2147483648
    %v723 = vmul.f32 %v722, 1.442695
    %v724 = vpow.pop %v723
    %v725 = vadd.f32 %v724, 1.0
    %v726 = vrcp.pop %v725
    %v727 = vmul.f32 %v725, %v726
    %v728 = vsub.f32 1.0, %v727
    %v729 = vmul.f32 %v726, %v728
    %v730 = vadd.f32 %v726, %v729
    %vm731 = vweird.f32 %v725
    %vm732 = vweird.f32 %v726
    %vm733 = vmor %vm731, %vm732
    %v734 = vsel %vm733, %v726, %v730
    %v735 = vand.u32 2147483647, %v725
    %vm736 = vcmp.eq.f32.partialorder %v735, 8.507059e+37
    %v737 = vand.u32 %v725, 2147483648
    %v738 = vor.u32 1.1754944e-38, %v737
    %v739 = vsel %vm736, %v738, %v734
    %v740 = vmul.f32 1.0, %v739
    %v741 = vadd.f32 %v692, %v231
    %v742 = vmul.f32 %v718, %v741
    %v743 = vadd.f32 %v633, %v742
    %v744 = vtanh.pop %v743
    %v745 = vsub.f32 1.0, %v740
    %v746 = vmul.f32 %v745, %v744
    %v747 = vmul.f32 %v740, %v630
    %v748 = vadd.f32 %v746, %v747
    %p749 = scmp.ge.s32.totalorder %s70, 4
    %s750 = scalar_select %p749, 1, 0
    %s751 = scvt.s32.f32 %s750
    %v752 = vstv %s751
    %v753 = vmul.f32 %v752, %v748
    %s754 = ssub.f32 1.0, %s751
    %v755 = vstv %s754
    %v756 = vmul.f32 %v755, %v630
    %v757 = vadd.f32 %v753, %v756
    %s758 = scalar_lea.vmem [#allocation4], 60
    %v759 = vld [vmem:[%s758] sm:$0xff]
    %v760 = vld [vmem:[%s758 + $0x8] sm:$0xf]
    %761 = vmatpush.msra.mxu0 %v118
    %762 = vmatpush.msra.mxu0 %v115
    %763 = vmatpush.msra.mxu0 %v112
    %764 = vmatpush.msra.mxu0 %v109
    %765 = vmatpush.msra.mxu0 %v106
    %766 = vmatpush.msra.mxu0 %v103
    %767 = vmatpush.msra.mxu0 %v100
    %768 = vmatpush.msra.mxu0 %v97
    %769 = vmatpush.msra.mxu0 %v94
    %770 = vmatpush.msra.mxu0 %v91
    %771 = vmatpush.msra.mxu0 %v88
    %772 = vmatpush.msra.mxu0 %v85
    %773 = vmatpush.msra.mxu0 %v82
    %774 = vmatpush.msra.mxu0 %v79
    %775 = vmatpush.msra.mxu0 %v76
    %776 = vmatpush.msra.mxu0 %v73
    %777 = vmatmul.f32.gmra.mxu0 %v757
    %v778 = vpop.f32.mrf.mxu0
    %v779 = vadd.f32 0.0, %v778
    %780 = vdwg.mxu0
    %781 = vmatpush.msra.mxu0 %v119
    %782 = vmatpush.msra.mxu0 %v116
    %783 = vmatpush.msra.mxu0 %v113
    %784 = vmatpush.msra.mxu0 %v110
    %785 = vmatpush.msra.mxu0 %v107
    %786 = vmatpush.msra.mxu0 %v104
    %787 = vmatpush.msra.mxu0 %v101
    %788 = vmatpush.msra.mxu0 %v98
    %789 = vmatpush.msra.mxu0 %v95
    %790 = vmatpush.msra.mxu0 %v92
    %791 = vmatpush.msra.mxu0 %v89
    %792 = vmatpush.msra.mxu0 %v86
    %793 = vmatpush.msra.mxu0 %v83
    %794 = vmatpush.msra.mxu0 %v80
    %795 = vmatpush.msra.mxu0 %v77
    %796 = vmatpush.msra.mxu0 %v74
    %797 = vmatmul.f32.gmra.mxu0 %v757
    %v798 = vpop.f32.mrf.mxu0
    %v799 = vadd.f32 0.0, %v798
    %800 = vdwg.mxu0
    %801 = vmatpush.msra.mxu0 %v120
    %802 = vmatpush.msra.mxu0 %v117
    %803 = vmatpush.msra.mxu0 %v114
    %804 = vmatpush.msra.mxu0 %v111
    %805 = vmatpush.msra.mxu0 %v108
    %806 = vmatpush.msra.mxu0 %v105
    %807 = vmatpush.msra.mxu0 %v102
    %808 = vmatpush.msra.mxu0 %v99
    %809 = vmatpush.msra.mxu0 %v96
    %810 = vmatpush.msra.mxu0 %v93
    %811 = vmatpush.msra.mxu0 %v90
    %812 = vmatpush.msra.mxu0 %v87
    %813 = vmatpush.msra.mxu0 %v84
    %814 = vmatpush.msra.mxu0 %v81
    %815 = vmatpush.msra.mxu0 %v78
    %816 = vmatpush.msra.mxu0 %v75
    %817 = vmatmul.f32.gmra.mxu0 %v757
    %v818 = vpop.f32.mrf.mxu0
    %v819 = vadd.f32 0.0, %v818
    %820 = vdwg.mxu0
    %v823 = vrot.slane %v799, 4
    %v824 = vsel %vm184, %v779, %v823
    %v826 = vadd.f32 %v759, %v824
    %v827 = vxor.u32 %v826, 2147483648
    %v828 = vmul.f32 %v827, 1.442695
    %v829 = vpow.pop %v828
    %v830 = vadd.f32 %v829, 1.0
    %v831 = vrcp.pop %v830
    %v832 = vmul.f32 %v830, %v831
    %v833 = vsub.f32 1.0, %v832
    %v834 = vmul.f32 %v831, %v833
    %v835 = vadd.f32 %v831, %v834
    %vm836 = vweird.f32 %v830
    %vm837 = vweird.f32 %v831
    %vm838 = vmor %vm836, %vm837
    %v839 = vsel %vm838, %v831, %v835
    %v840 = vand.u32 2147483647, %v830
    %vm841 = vcmp.eq.f32.partialorder %v840, 8.507059e+37
    %v842 = vand.u32 %v830, 2147483648
    %v843 = vor.u32 1.1754944e-38, %v842
    %v844 = vsel %vm841, %v843, %v839
    %v845 = vmul.f32 1.0, %v844
    %v847 = vrot.slane %v826, 4
    %v849 = vxor.u32 %v847, 2147483648
    %v850 = vmul.f32 %v849, 1.442695
    %v851 = vpow.pop %v850
    %v852 = vadd.f32 %v851, 1.0
    %v853 = vrcp.pop %v852
    %v854 = vmul.f32 %v852, %v853
    %v855 = vsub.f32 1.0, %v854
    %v856 = vmul.f32 %v853, %v855
    %v857 = vadd.f32 %v853, %v856
    %vm858 = vweird.f32 %v852
    %vm859 = vweird.f32 %v853
    %vm860 = vmor %vm858, %vm859
    %v861 = vsel %vm860, %v853, %v857
    %v862 = vand.u32 2147483647, %v852
    %vm863 = vcmp.eq.f32.partialorder %v862, 8.507059e+37
    %v864 = vand.u32 %v852, 2147483648
    %v865 = vor.u32 1.1754944e-38, %v864
    %v866 = vsel %vm863, %v865, %v861
    %v867 = vmul.f32 1.0, %v866
    %v868 = vadd.f32 %v819, %v231
    %v869 = vmul.f32 %v845, %v868
    %v870 = vadd.f32 %v760, %v869
    %v871 = vtanh.pop %v870
    %v872 = vsub.f32 1.0, %v867
    %v873 = vmul.f32 %v872, %v871
    %v874 = vmul.f32 %v867, %v757
    %v875 = vadd.f32 %v873, %v874
    %p876 = scmp.ge.s32.totalorder %s70, 5
    %s877 = scalar_select %p876, 1, 0
    %s878 = scvt.s32.f32 %s877
    %v879 = vstv %s878
    %v880 = vmul.f32 %v879, %v875
    %s881 = ssub.f32 1.0, %s878
    %v882 = vstv %s881
    %v883 = vmul.f32 %v882, %v757
    %v884 = vadd.f32 %v880, %v883
    %s885 = scalar_lea.vmem [#allocation4], 72
    %v886 = vld [vmem:[%s885] sm:$0xff]
    %v887 = vld [vmem:[%s885 + $0x8] sm:$0xf]
    %888 = vmatpush.msra.mxu0 %v118
    %889 = vmatpush.msra.mxu0 %v115
    %890 = vmatpush.msra.mxu0 %v112
    %891 = vmatpush.msra.mxu0 %v109
    %892 = vmatpush.msra.mxu0 %v106
    %893 = vmatpush.msra.mxu0 %v103
    %894 = vmatpush.msra.mxu0 %v100
    %895 = vmatpush.msra.mxu0 %v97
    %896 = vmatpush.msra.mxu0 %v94
    %897 = vmatpush.msra.mxu0 %v91
    %898 = vmatpush.msra.mxu0 %v88
    %899 = vmatpush.msra.mxu0 %v85
    %900 = vmatpush.msra.mxu0 %v82
    %901 = vmatpush.msra.mxu0 %v79
    %902 = vmatpush.msra.mxu0 %v76
    %903 = vmatpush.msra.mxu0 %v73
    %904 = vmatmul.f32.gmra.mxu0 %v884
    %v905 = vpop.f32.mrf.mxu0
    %v906 = vadd.f32 0.0, %v905
    %907 = vdwg.mxu0
    %908 = vmatpush.msra.mxu0 %v119
    %909 = vmatpush.msra.mxu0 %v116
    %910 = vmatpush.msra.mxu0 %v113
    %911 = vmatpush.msra.mxu0 %v110
    %912 = vmatpush.msra.mxu0 %v107
    %913 = vmatpush.msra.mxu0 %v104
    %914 = vmatpush.msra.mxu0 %v101
    %915 = vmatpush.msra.mxu0 %v98
    %916 = vmatpush.msra.mxu0 %v95
    %917 = vmatpush.msra.mxu0 %v92
    %918 = vmatpush.msra.mxu0 %v89
    %919 = vmatpush.msra.mxu0 %v86
    %920 = vmatpush.msra.mxu0 %v83
    %921 = vmatpush.msra.mxu0 %v80
    %922 = vmatpush.msra.mxu0 %v77
    %923 = vmatpush.msra.mxu0 %v74
    %924 = vmatmul.f32.gmra.mxu0 %v884
    %v925 = vpop.f32.mrf.mxu0
    %v926 = vadd.f32 0.0, %v925
    %927 = vdwg.mxu0
    %928 = vmatpush.msra.mxu0 %v120
    %929 = vmatpush.msra.mxu0 %v117
    %930 = vmatpush.msra.mxu0 %v114
    %931 = vmatpush.msra.mxu0 %v111
    %932 = vmatpush.msra.mxu0 %v108
    %933 = vmatpush.msra.mxu0 %v105
    %934 = vmatpush.msra.mxu0 %v102
    %935 = vmatpush.msra.mxu0 %v99
    %936 = vmatpush.msra.mxu0 %v96
    %937 = vmatpush.msra.mxu0 %v93
    %938 = vmatpush.msra.mxu0 %v90
    %939 = vmatpush.msra.mxu0 %v87
    %940 = vmatpush.msra.mxu0 %v84
    %941 = vmatpush.msra.mxu0 %v81
    %942 = vmatpush.msra.mxu0 %v78
    %943 = vmatpush.msra.mxu0 %v75
    %944 = vmatmul.f32.gmra.mxu0 %v884
    %v945 = vpop.f32.mrf.mxu0
    %v946 = vadd.f32 0.0, %v945
    %947 = vdwg.mxu0
    %v950 = vrot.slane %v926, 4
    %v951 = vsel %vm184, %v906, %v950
    %v953 = vadd.f32 %v886, %v951
    %v954 = vxor.u32 %v953, 2147483648
    %v955 = vmul.f32 %v954, 1.442695
    %v956 = vpow.pop %v955
    %v957 = vadd.f32 %v956, 1.0
    %v958 = vrcp.pop %v957
    %v959 = vmul.f32 %v957, %v958
    %v960 = vsub.f32 1.0, %v959
    %v961 = vmul.f32 %v958, %v960
    %v962 = vadd.f32 %v958, %v961
    %vm963 = vweird.f32 %v957
    %vm964 = vweird.f32 %v958
    %vm965 = vmor %vm963, %vm964
    %v966 = vsel %vm965, %v958, %v962
    %v967 = vand.u32 2147483647, %v957
    %vm968 = vcmp.eq.f32.partialorder %v967, 8.507059e+37
    %v969 = vand.u32 %v957, 2147483648
    %v970 = vor.u32 1.1754944e-38, %v969
    %v971 = vsel %vm968, %v970, %v966
    %v972 = vmul.f32 1.0, %v971
    %v974 = vrot.slane %v953, 4
    %v976 = vxor.u32 %v974, 2147483648
    %v977 = vmul.f32 %v976, 1.442695
    %v978 = vpow.pop %v977
    %v979 = vadd.f32 %v978, 1.0
    %v980 = vrcp.pop %v979
    %v981 = vmul.f32 %v979, %v980
    %v982 = vsub.f32 1.0, %v981
    %v983 = vmul.f32 %v980, %v982
    %v984 = vadd.f32 %v980, %v983
    %vm985 = vweird.f32 %v979
    %vm986 = vweird.f32 %v980
    %vm987 = vmor %vm985, %vm986
    %v988 = vsel %vm987, %v980, %v984
    %v989 = vand.u32 2147483647, %v979
    %vm990 = vcmp.eq.f32.partialorder %v989, 8.507059e+37
    %v991 = vand.u32 %v979, 2147483648
    %v992 = vor.u32 1.1754944e-38, %v991
    %v993 = vsel %vm990, %v992, %v988
    %v994 = vmul.f32 1.0, %v993
    %v995 = vadd.f32 %v946, %v231
    %v996 = vmul.f32 %v972, %v995
    %v997 = vadd.f32 %v887, %v996
    %v998 = vtanh.pop %v997
    %v999 = vsub.f32 1.0, %v994
    %v1000 = vmul.f32 %v999, %v998
    %v1001 = vmul.f32 %v994, %v884
    %v1002 = vadd.f32 %v1000, %v1001
    %p1003 = scmp.ge.s32.totalorder %s70, 6
    %s1004 = scalar_select %p1003, 1, 0
    %s1005 = scvt.s32.f32 %s1004
    %v1006 = vstv %s1005
    %v1007 = vmul.f32 %v1006, %v1002
    %s1008 = ssub.f32 1.0, %s1005
    %v1009 = vstv %s1008
    %v1010 = vmul.f32 %v1009, %v884
    %v1011 = vadd.f32 %v1007, %v1010
    %s1012 = scalar_lea.vmem [#allocation4], 84
    %v1013 = vld [vmem:[%s1012] sm:$0xff]
    %v1014 = vld [vmem:[%s1012 + $0x8] sm:$0xf]
    %1015 = vmatpush.msra.mxu0 %v118
    %1016 = vmatpush.msra.mxu0 %v115
    %1017 = vmatpush.msra.mxu0 %v112
    %1018 = vmatpush.msra.mxu0 %v109
    %1019 = vmatpush.msra.mxu0 %v106
    %1020 = vmatpush.msra.mxu0 %v103
    %1021 = vmatpush.msra.mxu0 %v100
    %1022 = vmatpush.msra.mxu0 %v97
    %1023 = vmatpush.msra.mxu0 %v94
    %1024 = vmatpush.msra.mxu0 %v91
    %1025 = vmatpush.msra.mxu0 %v88
    %1026 = vmatpush.msra.mxu0 %v85
    %1027 = vmatpush.msra.mxu0 %v82
    %1028 = vmatpush.msra.mxu0 %v79
    %1029 = vmatpush.msra.mxu0 %v76
    %1030 = vmatpush.msra.mxu0 %v73
    %1031 = vmatmul.f32.gmra.mxu0 %v1011
    %v1032 = vpop.f32.mrf.mxu0
    %v1033 = vadd.f32 0.0, %v1032
    %1034 = vdwg.mxu0
    %1035 = vmatpush.msra.mxu0 %v119
    %1036 = vmatpush.msra.mxu0 %v116
    %1037 = vmatpush.msra.mxu0 %v113
    %1038 = vmatpush.msra.mxu0 %v110
    %1039 = vmatpush.msra.mxu0 %v107
    %1040 = vmatpush.msra.mxu0 %v104
    %1041 = vmatpush.msra.mxu0 %v101
    %1042 = vmatpush.msra.mxu0 %v98
    %1043 = vmatpush.msra.mxu0 %v95
    %1044 = vmatpush.msra.mxu0 %v92
    %1045 = vmatpush.msra.mxu0 %v89
    %1046 = vmatpush.msra.mxu0 %v86
    %1047 = vmatpush.msra.mxu0 %v83
    %1048 = vmatpush.msra.mxu0 %v80
    %1049 = vmatpush.msra.mxu0 %v77
    %1050 = vmatpush.msra.mxu0 %v74
    %1051 = vmatmul.f32.gmra.mxu0 %v1011
    %v1052 = vpop.f32.mrf.mxu0
    %v1053 = vadd.f32 0.0, %v1052
    %1054 = vdwg.mxu0
    %1055 = vmatpush.msra.mxu0 %v120
    %1056 = vmatpush.msra.mxu0 %v117
    %1057 = vmatpush.msra.mxu0 %v114
    %1058 = vmatpush.msra.mxu0 %v111
    %1059 = vmatpush.msra.mxu0 %v108
    %1060 = vmatpush.msra.mxu0 %v105
    %1061 = vmatpush.msra.mxu0 %v102
    %1062 = vmatpush.msra.mxu0 %v99
    %1063 = vmatpush.msra.mxu0 %v96
    %1064 = vmatpush.msra.mxu0 %v93
    %1065 = vmatpush.msra.mxu0 %v90
    %1066 = vmatpush.msra.mxu0 %v87
    %1067 = vmatpush.msra.mxu0 %v84
    %1068 = vmatpush.msra.mxu0 %v81
    %1069 = vmatpush.msra.mxu0 %v78
    %1070 = vmatpush.msra.mxu0 %v75
    %1071 = vmatmul.f32.gmra.mxu0 %v1011
    %v1072 = vpop.f32.mrf.mxu0
    %v1073 = vadd.f32 0.0, %v1072
    %1074 = vdwg.mxu0
    %v1077 = vrot.slane %v1053, 4
    %v1078 = vsel %vm184, %v1033, %v1077
    %v1080 = vadd.f32 %v1013, %v1078
    %v1081 = vxor.u32 %v1080, 2147483648
    %v1082 = vmul.f32 %v1081, 1.442695
    %v1083 = vpow.pop %v1082
    %v1084 = vadd.f32 %v1083, 1.0
    %v1085 = vrcp.pop %v1084
    %v1086 = vmul.f32 %v1084, %v1085
    %v1087 = vsub.f32 1.0, %v1086
    %v1088 = vmul.f32 %v1085, %v1087
    %v1089 = vadd.f32 %v1085, %v1088
    %vm1090 = vweird.f32 %v1084
    %vm1091 = vweird.f32 %v1085
    %vm1092 = vmor %vm1090, %vm1091
    %v1093 = vsel %vm1092, %v1085, %v1089
    %v1094 = vand.u32 2147483647, %v1084
    %vm1095 = vcmp.eq.f32.partialorder %v1094, 8.507059e+37
    %v1096 = vand.u32 %v1084, 2147483648
    %v1097 = vor.u32 1.1754944e-38, %v1096
    %v1098 = vsel %vm1095, %v1097, %v1093
    %v1099 = vmul.f32 1.0, %v1098
    %v1101 = vrot.slane %v1080, 4
    %v1103 = vxor.u32 %v1101, 2147483648
    %v1104 = vmul.f32 %v1103, 1.442695
    %v1105 = vpow.pop %v1104
    %v1106 = vadd.f32 %v1105, 1.0
    %v1107 = vrcp.pop %v1106
    %v1108 = vmul.f32 %v1106, %v1107
    %v1109 = vsub.f32 1.0, %v1108
    %v1110 = vmul.f32 %v1107, %v1109
    %v1111 = vadd.f32 %v1107, %v1110
    %vm1112 = vweird.f32 %v1106
    %vm1113 = vweird.f32 %v1107
    %vm1114 = vmor %vm1112, %vm1113
    %v1115 = vsel %vm1114, %v1107, %v1111
    %v1116 = vand.u32 2147483647, %v1106
    %vm1117 = vcmp.eq.f32.partialorder %v1116, 8.507059e+37
    %v1118 = vand.u32 %v1106, 2147483648
    %v1119 = vor.u32 1.1754944e-38, %v1118
    %v1120 = vsel %vm1117, %v1119, %v1115
    %v1121 = vmul.f32 1.0, %v1120
    %v1122 = vadd.f32 %v1073, %v231
    %v1123 = vmul.f32 %v1099, %v1122
    %v1124 = vadd.f32 %v1014, %v1123
    %v1125 = vtanh.pop %v1124
    %v1126 = vsub.f32 1.0, %v1121
    %v1127 = vmul.f32 %v1126, %v1125
    %v1128 = vmul.f32 %v1121, %v1011
    %v1129 = vadd.f32 %v1127, %v1128
    %p1130 = scmp.ge.s32.totalorder %s70, 7
    %s1131 = scalar_select %p1130, 1, 0
    %s1132 = scvt.s32.f32 %s1131
    %v1133 = vstv %s1132
    %v1134 = vmul.f32 %v1133, %v1129
    %s1135 = ssub.f32 1.0, %s1132
    %v1136 = vstv %s1135
    %v1137 = vmul.f32 %v1136, %v1011
    %v1138 = vadd.f32 %v1134, %v1137
    %v1139 = vld [vmem:[#allocation9] sm:$0xff]
    %v1140 = vld [vmem:[#allocation9 + $0x8] sm:$0xff]
    %v1141 = vld [vmem:[#allocation9 + $0x10] sm:$0xff]
    %v1142 = vld [vmem:[#allocation9 + $0x18] sm:$0xff]
    %v1143 = vld [vmem:[#allocation9 + $0x20] sm:$0xff]
    %v1144 = vld [vmem:[#allocation9 + $0x28] sm:$0xff]
    %v1145 = vld [vmem:[#allocation9 + $0x30] sm:$0xff]
    %v1146 = vld [vmem:[#allocation9 + $0x38] sm:$0xff]
    %v1147 = vld [vmem:[#allocation9 + $0x40] sm:$0xff]
    %v1148 = vld [vmem:[#allocation9 + $0x48] sm:$0xff]
    %v1149 = vld [vmem:[#allocation9 + $0x50] sm:$0xff]
    %v1150 = vld [vmem:[#allocation9 + $0x58] sm:$0xff]
    %v1151 = vld [vmem:[#allocation9 + $0x60] sm:$0xff]
    %v1152 = vld [vmem:[#allocation9 + $0x68] sm:$0xff]
    %v1153 = vld [vmem:[#allocation9 + $0x70] sm:$0xff]
    %v1154 = vld [vmem:[#allocation9 + $0x78] sm:$0xff]
    %v1155 = vld [vmem:[%s5] sm:$0x1]
    %v1157 = vperm.slane %v1155, 0
    %1159 = vmatpush.msra.mxu0 %v1154
    %1160 = vmatpush.msra.mxu0 %v1153
    %1161 = vmatpush.msra.mxu0 %v1152
    %1162 = vmatpush.msra.mxu0 %v1151
    %1163 = vmatpush.msra.mxu0 %v1150
    %1164 = vmatpush.msra.mxu0 %v1149
    %1165 = vmatpush.msra.mxu0 %v1148
    %1166 = vmatpush.msra.mxu0 %v1147
    %1167 = vmatpush.msra.mxu0 %v1146
    %1168 = vmatpush.msra.mxu0 %v1145
    %1169 = vmatpush.msra.mxu0 %v1144
    %1170 = vmatpush.msra.mxu0 %v1143
    %1171 = vmatpush.msra.mxu0 %v1142
    %1172 = vmatpush.msra.mxu0 %v1141
    %1173 = vmatpush.msra.mxu0 %v1140
    %1174 = vmatpush.msra.mxu0 %v1139
    %1175 = vmatmul.f32.gmra.mxu0 %v1138
    %v1176 = vpop.f32.mrf.mxu0
    %v1177 = vadd.f32 %v1157, %v1176
    %1178 = vdwg.mxu0
    %1179 = vst [vmem:[#allocation10] sm:$0xf] %v1177
    // Predicated region
    $region34: #{tpu_custom_call.1} parent=1 // pred_check
      _
    $region35: #{tpu_custom_call.1} parent=1 // pred_check_branch
      %1181 = sbr.rel (0) target = $region37
    $region36: #{tpu_custom_call.1} parent=1 // pred_region
      %1183 = vsyncadd [#allocation6], 0
      %s1185 = sshll.u32 [#allocation10], 4
      %s1186 = int_to_ptr.vmem [resolvable:$true] %s1185
      %s1187 = sshll.u32 %s6, 4
      %s1188 = int_to_ptr.hbm [resolvable:$true] %s1187
      %1190 = dma.vmem_to_hbm [thread:$0]  %s1186, 64, %s1188, [#allocation6]
    $region37: #{tpu_custom_call.1} parent=1 // pred_fallthru
      _
    // Predicated region
    $region38: #{tpu_custom_call.1} parent=1 // pred_check
      _
    $region39: #{tpu_custom_call.1} parent=1 // pred_check_branch
      %1192 = sbr.rel (0) target = $region41
    $region40: #{tpu_custom_call.1} parent=1 // pred_region
      %1194 = dma.done [#allocation6], 64
    $region41: #{tpu_custom_call.1} parent=1 // pred_fallthru
      _
    %1195 = vsyncpa [#allocation5], 1
    %1196 = vsyncpa [#allocation8], 1
    %1197 = vsyncpa [#allocation6], 1

</llo_original>
